<compile_context>
chip_gen: v5e
topology: v5e:2x2
jax: 0.10.0
libtpu: 0.0.40
codegen_flags: <defaults>
</compile_context>

<pallas_src>
import jax
import jax.numpy as jnp
from jax import lax
from jax.experimental import pallas as pl
from jax.experimental.pallas import tpu as pltpu


# ---------------------------------------------------------------------------
# helpers (same semantics as the PyTorch reference)
# ---------------------------------------------------------------------------
def make_divisible(value, divisor, min_value=None, round_down_protect=True):
    if min_value is None:
        min_value = divisor
    new_value = max(min_value, int(value + divisor / 2) // divisor * divisor)
    if round_down_protect and new_value < 0.9 * value:
        new_value += divisor
    return int(new_value)


def _fold_bn_into_conv(w, gamma, beta, mean, var, eps=1e-5):
    """Fold inference-mode BN into a conv weight whose LAST axis is the output channel."""
    scale = gamma / jnp.sqrt(var + eps)
    return w * scale, beta - mean * scale


def _conv_out_size(size, k, stride, pad):
    return (size + 2 * pad - k) // stride + 1


def _aligned_left_pad(p):
    # Left W padding rounded up to a multiple of 8 so the interior store into the padded
    # VMEM scratch is sublane aligned (the extra zero columns are never read).
    return ((p + 7) // 8) * 8 if p else 0


def _device_kind():
    try:
        return jax.devices()[0].device_kind.lower()
    except Exception:
        return ""


def _pick_dw_dtype(start_s, middle_s, w_in, w1):
    # bf16 padded scratch halves the dominant VMEM footprint (and uses the bf16 VPU) on
    # v6e/v7x.  bf16 packs two W rows per physical sublane, so only enable it when the
    # depthwise taps read W unstrided and the interior store windows are pair aligned;
    # v5e and older (no bf16 VPU) and strided/odd geometries keep f32.
    kind = _device_kind()
    if not ("v6" in kind or "v7" in kind):
        return jnp.float32
    if start_s != 1 or middle_s != 1 or (w_in % 2) or (w1 % 2):
        return jnp.float32
    return jnp.bfloat16


def _pick_vmem_limit_bytes():
    # Derive the scoped-VMEM override per generation instead of hard-coding 48 MiB:
    # ~48 MiB on 128 MiB parts (v5e / v6e), ~28 MiB on 64 MiB parts (v7x).
    cap = None
    try:
        cap = int(pltpu.get_tpu_info().vmem_capacity_bytes)
    except Exception:
        cap = None
    if cap is None:
        cap = 64 * 1024 * 1024 if "v7" in _device_kind() else 128 * 1024 * 1024
    return int(min(48 * 1024 * 1024, max(16 * 1024 * 1024, cap // 2 - 4 * 1024 * 1024)))


def _dw_strip_rows(w_out, c, budget_vregs=16, max_rows=8):
    # Rows per strip so the f32 strip accumulator stays comfortably inside the vreg file.
    # NOTE: lanes pad to 128, so the per-row cost uses ceil(c/128) lane tiles even for
    # narrow channel counts (VMEM/vreg budgeting with C rounded up to 128).
    per_row = max(1, (-(-w_out // 8)) * (-(-max(c, 1) // 128)))
    return max(1, min(max_rows, budget_vregs // per_row))


def _bcast_spec(shape):
    zeros = (0,) * len(shape)
    return pl.BlockSpec(shape, lambda b, _z=zeros: _z)


# ---------------------------------------------------------------------------
# fused forward pass (NHWC inside for DW/expand; lane-dense NCHW-style output)
# ---------------------------------------------------------------------------
def uib_block_forward(x_nhwc, params, *, start_k, start_s, middle_k, middle_s,
                      expand_filters, out_channels, mxu_dtype=jnp.bfloat16,
                      dw_dtype=None, vmem_limit_bytes=None):
    n, H, W, Cin = x_nhwc.shape
    E, Cout = expand_filters, out_channels

    # static conv-shape bookkeeping ------------------------------------------------
    p1 = (start_k - 1) // 2 if start_k else 0
    H1 = _conv_out_size(H, start_k, start_s, p1) if start_k else H
    W1 = _conv_out_size(W, start_k, start_s, p1) if start_k else W
    p2 = (middle_k - 1) // 2 if middle_k else 0
    H2 = _conv_out_size(H1, middle_k, middle_s, p2) if middle_k else H1
    W2 = _conv_out_size(W1, middle_k, middle_s, p2) if middle_k else W1
    M2 = H2 * W2

    if dw_dtype is None:
        dw_dtype = _pick_dw_dtype(start_s if start_k else 1,
                                  middle_s if middle_k else 1, W, W1)
    if vmem_limit_bytes is None:
        vmem_limit_bytes = _pick_vmem_limit_bytes()
    packed = jnp.dtype(dw_dtype).itemsize < 4

    wl1 = _aligned_left_pad(p1)
    wl2 = _aligned_left_pad(p2)

    def padded_w(w_int, wl, p):
        cw = wl + w_int + p
        return cw + (cw % 2 if packed else 0)      # keep packed stores pair aligned

    pad1_shape = (H + 2 * p1, padded_w(W, wl1, p1), Cin)
    pad2_shape = (H1 + 2 * p2, padded_w(W1, wl2, p2), E)

    strip1 = (_dw_strip_rows(W1, Cin) if start_k
              else max(1, min(H1, -(-256 // max(1, W1)))))
    strip2 = _dw_strip_rows(W2, E) if middle_k else 1
    proj_cols = 512                                 # projection lane chunk (multiple of 128)

    # ---------------- in-kernel helpers ----------------
    def zero_halo(pad_ref, p, h, w, wl):
        """Zero ONLY the padding halo; the interior is fully overwritten every step."""
        if p == 0:
            return
        cw_full = pad_ref.shape[1]
        c = pad_ref.shape[2]
        row_z = jnp.zeros((p, cw_full, c), pad_ref.dtype)
        pad_ref[0:p, :, :] = row_z                          # top halo rows
        pad_ref[p + h:p + h + p, :, :] = row_z              # bottom halo rows
        l0, l1 = wl - p, wl                                 # only the read halo columns
        r0, r1 = wl + w, wl + w + p
        if packed:                                          # pair-align packed stores
            l0 -= l0 % 2
            r1 += r1 % 2
        pad_ref[p:p + h, l0:l1, :] = jnp.zeros((h, l1 - l0, c), pad_ref.dtype)
        pad_ref[p:p + h, r0:r1, :] = jnp.zeros((h, r1 - r0, c), pad_ref.dtype)

    def dw_strip(pad_ref, w, k, s, h0, hs, w_out, wl, p):
        """One strip of depthwise-conv output rows, accumulated as one summed vreg
        expression over the k*k taps (first tap = assignment; single store by caller)."""
        acc = None
        for i in range(k):
            r0 = h0 * s + i
            for j in range(k):
                c0 = wl - p + j
                if s == 1:
                    tap = pad_ref[r0:r0 + hs, c0:c0 + w_out, :]
                else:
                    # conv stride applied in-kernel via strided sublane reads
                    tap = pad_ref[pl.ds(r0, hs, s), pl.ds(c0, w_out, s), :]
                term = tap.astype(jnp.float32) * w[i:i + 1, j:j + 1, :]
                acc = term if acc is None else acc + term
        return acc                                          # (hs, w_out, C) float32

    # ---------------- the fused kernel ----------------
    def kernel(*refs):
        it = iter(refs)
        x_ref = next(it)
        if start_k:
            w1_ref, b1_ref = next(it), next(it)
        we_ref, be_ref = next(it), next(it)
        if middle_k:
            w2_ref, b2_ref = next(it), next(it)
        wp_ref, bp_ref = next(it), next(it)
        o_ref = next(it)
        pad1_ref = next(it) if start_k else None
        pad2_ref = next(it) if middle_k else None
        y2_ref = next(it)

        # hoisted weight / bias loads (out of the tap loops)
        w_e, b_e = we_ref[...], be_ref[...]                 # (Cin,E) mxu / (1,E) f32
        if start_k:
            w1, b1 = w1_ref[...], b1_ref[...]               # (k1,k1,Cin) f32 / (1,Cin)
            zero_halo(pad1_ref, p1, H, W, wl1)
            for h0 in range(0, H, 8):                       # strip-wise copy bounds vregs
                hs = min(8, H - h0)
                pad1_ref[p1 + h0:p1 + h0 + hs, wl1:wl1 + W, :] = (
                    x_ref[0, h0:h0 + hs, :, :].astype(pad1_ref.dtype))
        if middle_k:
            w2, b2 = w2_ref[...], b2_ref[...]               # (k2,k2,E) f32 / (1,E)
            zero_halo(pad2_ref, p2, H1, W1, wl2)

        # stage 1: (optional start DW + BN) -> expand 1x1 + BN + ReLU6, per H1 strip.
        # The expanded activation goes straight into the middle-DW padded scratch (or y2
        # when there is no middle DW); it never exists as a full-size f32 tensor.
        for h0 in range(0, H1, strip1):
            hs = min(strip1, H1 - h0)
            if start_k:
                s = dw_strip(pad1_ref, w1, start_k, start_s, h0, hs, W1, wl1, p1) + b1
                lhs = s.reshape(hs * W1, Cin).astype(mxu_dtype)
            else:
                lhs = x_ref[0, h0:h0 + hs, :, :].reshape(hs * W1, Cin).astype(mxu_dtype)
            e = jnp.dot(lhs, w_e, preferred_element_type=jnp.float32)
            e = jnp.clip(e + b_e, 0.0, 6.0)                 # (hs*W1, E) f32
            if middle_k:
                pad2_ref[p2 + h0:p2 + h0 + hs, wl2:wl2 + W1, :] = (
                    e.reshape(hs, W1, E).astype(pad2_ref.dtype))
            else:
                y2_ref[h0 * W1:(h0 + hs) * W1, :] = e.astype(y2_ref.dtype)

        # stage 2: middle DW + BN + ReLU6 (stride applied in the strided tap reads)
        if middle_k:
            for h0 in range(0, H2, strip2):
                hs = min(strip2, H2 - h0)
                m = dw_strip(pad2_ref, w2, middle_k, middle_s, h0, hs, W2, wl2, p2) + b2
                m = jnp.clip(m, 0.0, 6.0)
                y2_ref[h0 * W2:(h0 + hs) * W2, :] = (
                    m.reshape(hs * W2, E).astype(y2_ref.dtype))

        # stage 3: projection 1x1 + BN, computed TRANSPOSED so the store is lane-dense:
        # (Cout,E) x (M2,E)^T -> (Cout, M2); spatial sits on the 128-lane axis and the
        # result block is already NCHW.
        w_pt, b_p = wp_ref[...], bp_ref[...]                # (Cout,E) mxu / (Cout,1) f32
        for m0 in range(0, M2, proj_cols):
            ms = min(proj_cols, M2 - m0)
            o = lax.dot_general(w_pt, y2_ref[m0:m0 + ms, :],
                                (((1,), (1,)), ((), ())),
                                preferred_element_type=jnp.float32)
            o_ref[0, :, m0:m0 + ms] = (o + b_p).astype(o_ref.dtype)

    # ---------------- assemble the pallas_call ----------------
    inputs = [x_nhwc]
    in_specs = [pl.BlockSpec((1, H, W, Cin), lambda b: (b, 0, 0, 0))]

    def add(name):
        arr = params[name]
        inputs.append(arr)
        in_specs.append(_bcast_spec(arr.shape))

    if start_k:
        add("w_start"); add("b_start")
    add("w_expand"); add("b_expand")
    if middle_k:
        add("w_middle"); add("b_middle")
    add("w_proj_t"); add("b_proj")

    scratch_shapes = []
    if start_k:
        scratch_shapes.append(pltpu.VMEM(pad1_shape, dw_dtype))
    if middle_k:
        scratch_shapes.append(pltpu.VMEM(pad2_shape, dw_dtype))
    scratch_shapes.append(pltpu.VMEM((M2, E), mxu_dtype))

    out = pl.pallas_call(
        kernel,
        out_shape=jax.ShapeDtypeStruct((n, Cout, M2), x_nhwc.dtype),
        grid=(n,),
        in_specs=in_specs,
        out_specs=pl.BlockSpec((1, Cout, M2), lambda b: (b, 0, 0)),
        scratch_shapes=scratch_shapes,
        compiler_params=pltpu.CompilerParams(
            dimension_semantics=("parallel",),
            vmem_limit_bytes=vmem_limit_bytes,
        ),
    )(*inputs)

    # (N, Cout, H2*W2) -> NCHW with a reshape only (no output transpose).
    return out.reshape(n, Cout, H2, W2)


# ---------------------------------------------------------------------------
# the block
# ---------------------------------------------------------------------------
class UniversalInvertedBottleneckBlockPallas:
    """Pallas/TPU forward pass of MobileNetV4's UniversalInvertedBottleneckBlock."""

    def __init__(self, key, in_channels, out_channels, start_dw_kernel_size,
                 middle_dw_kernel_size, middle_dw_downsample, stride, expand_ratio,
                 mxu_dtype=jnp.bfloat16, dw_dtype=None):
        self.in_channels = in_channels
        self.out_channels = out_channels
        self.start_k = int(start_dw_kernel_size)
        self.middle_k = int(middle_dw_kernel_size)
        self.start_s = stride if (self.start_k and not middle_dw_downsample) else 1
        self.middle_s = stride if (self.middle_k and middle_dw_downsample) else 1
        self.expand_filters = make_divisible(in_channels * expand_ratio, 8)
        self.mxu_dtype = mxu_dtype
        self.dw_dtype = dw_dtype

        keys = iter(jax.random.split(key, 24))

        def conv_w(shape, scale=0.1):
            return jax.random.normal(next(keys), shape, jnp.float32) * scale

        def bn(c):
            gamma = jax.random.uniform(next(keys), (c,), jnp.float32, 0.5, 1.5)
            beta = jax.random.normal(next(keys), (c,), jnp.float32) * 0.1
            mean = jax.random.normal(next(keys), (c,), jnp.float32) * 0.1
            var = jax.random.uniform(next(keys), (c,), jnp.float32, 0.5, 1.5)
            return gamma, beta, mean, var

        # TODO(synk): inference-mode BN running statistics are folded into the weights;
        #             training-mode batch statistics are not computed in-kernel.
        params = {}
        if self.start_k:
            w, b = _fold_bn_into_conv(
                conv_w((self.start_k, self.start_k, in_channels)), *bn(in_channels))
            params["w_start"], params["b_start"] = w, b.reshape(1, -1)
        w, b = _fold_bn_into_conv(
            conv_w((in_channels, self.expand_filters)), *bn(self.expand_filters))
        params["w_expand"], params["b_expand"] = w.astype(mxu_dtype), b.reshape(1, -1)
        if self.middle_k:
            w, b = _fold_bn_into_conv(
                conv_w((self.middle_k, self.middle_k, self.expand_filters)),
                *bn(self.expand_filters))
            params["w_middle"], params["b_middle"] = w, b.reshape(1, -1)
        w, b = _fold_bn_into_conv(
            conv_w((self.expand_filters, out_channels)), *bn(out_channels))
        # projection weight stored pre-transposed (Cout, E) for the lane-dense NT matmul
        params["w_proj_t"] = jnp.transpose(w).astype(mxu_dtype)
        params["b_proj"] = b.reshape(-1, 1)
        self.params = params

    def __call__(self, x_nchw):
        # NCHW at the PyTorch boundary.  One input transpose to NHWC (channels on the
        # lane axis for the DW/expand stages); the kernel emits (N, Cout, H2*W2), which
        # reshapes straight back to NCHW, so there is no output transpose.
        x = jnp.transpose(x_nchw, (0, 2, 3, 1))
        return uib_block_forward(
            x, self.params,
            start_k=self.start_k, start_s=self.start_s,
            middle_k=self.middle_k, middle_s=self.middle_s,
            expand_filters=self.expand_filters, out_channels=self.out_channels,
            mxu_dtype=self.mxu_dtype, dw_dtype=self.dw_dtype)


# ---------------------------------------------------------------------------
if __name__ == "__main__":
    key = jax.random.PRNGKey(0)
    k_param, k_input = jax.random.split(key)

    # Config consistent with the module: in=8, out=16, start_dw=3, middle_dw=3,
    # middle_dw_downsample=True, stride=2, expand_ratio=4 -> expand_filters = 32.
    block = UniversalInvertedBottleneckBlockPallas(
        k_param,
        in_channels=8,
        out_channels=16,
        start_dw_kernel_size=3,
        middle_dw_kernel_size=3,
        middle_dw_downsample=True,
        stride=2,
        expand_ratio=4.0,
    )

    x = jax.random.normal(k_input, (2, 8, 16, 16), jnp.float32)  # NCHW
    y = jax.block_until_ready(block(x))
    assert y.shape == (2, 16, 8, 8), y.shape
    print("KERNEL_OK")
</pallas_src>

<mosaic_0001>
module attributes {stable_mosaic.version = 11 : i64} {
  func.func @kernel(%arg0: i32, %arg1: memref<1x16x16x8xf32, #tpu.memory_space<vmem>>, %arg2: memref<3x3x8xf32, #tpu.memory_space<vmem>>, %arg3: memref<1x8xf32, #tpu.memory_space<vmem>>, %arg4: memref<8x32xbf16, #tpu.memory_space<vmem>>, %arg5: memref<1x32xf32, #tpu.memory_space<vmem>>, %arg6: memref<3x3x32xf32, #tpu.memory_space<vmem>>, %arg7: memref<1x32xf32, #tpu.memory_space<vmem>>, %arg8: memref<16x32xbf16, #tpu.memory_space<vmem>>, %arg9: memref<16x1xf32, #tpu.memory_space<vmem>>, %arg10: memref<1x16x64xf32, #tpu.memory_space<vmem>>, %arg11: memref<18x25x8xf32, #tpu.memory_space<vmem>>, %arg12: memref<18x25x32xf32, #tpu.memory_space<vmem>>, %arg13: memref<64x32xbf16, #tpu.memory_space<vmem>>) attributes {dimension_semantics = [#tpu.dimension_semantics<parallel>], iteration_bounds = array<i64: 2>, scalar_prefetch = 0 : i64, scratch_operands = 3 : i64, tpu.core_type = #tpu.core_type<tc>, window_params = [{transform_indices = @transform_0, window_bounds = array<i64: 1, 16, 16, 8>}, {pipeline_mode = #tpu.pipeline_mode<synchronous>, transform_indices = @transform_1, window_bounds = array<i64: 3, 3, 8>}, {pipeline_mode = #tpu.pipeline_mode<synchronous>, transform_indices = @transform_2, window_bounds = array<i64: 1, 8>}, {pipeline_mode = #tpu.pipeline_mode<synchronous>, transform_indices = @transform_3, window_bounds = array<i64: 8, 32>}, {pipeline_mode = #tpu.pipeline_mode<synchronous>, transform_indices = @transform_4, window_bounds = array<i64: 1, 32>}, {pipeline_mode = #tpu.pipeline_mode<synchronous>, transform_indices = @transform_5, window_bounds = array<i64: 3, 3, 32>}, {pipeline_mode = #tpu.pipeline_mode<synchronous>, transform_indices = @transform_6, window_bounds = array<i64: 1, 32>}, {pipeline_mode = #tpu.pipeline_mode<synchronous>, transform_indices = @transform_7, window_bounds = array<i64: 16, 32>}, {pipeline_mode = #tpu.pipeline_mode<synchronous>, transform_indices = @transform_8, window_bounds = array<i64: 16, 1>}, {transform_indices = @transform_9, window_bounds = array<i64: 1, 16, 64>}]} {
    %c0 = arith.constant 0 : index
    %c0_0 = arith.constant 0 : index
    %0 = vector.load %arg4[%c0, %c0_0] : memref<8x32xbf16, #tpu.memory_space<vmem>>, vector<8x32xbf16>
    %c0_1 = arith.constant 0 : index
    %c0_2 = arith.constant 0 : index
    %1 = vector.load %arg5[%c0_1, %c0_2] : memref<1x32xf32, #tpu.memory_space<vmem>>, vector<1x32xf32>
    %c0_3 = arith.constant 0 : index
    %c0_4 = arith.constant 0 : index
    %c0_5 = arith.constant 0 : index
    %2 = vector.load %arg2[%c0_3, %c0_4, %c0_5] : memref<3x3x8xf32, #tpu.memory_space<vmem>>, vector<3x3x8xf32>
    %c0_6 = arith.constant 0 : index
    %c0_7 = arith.constant 0 : index
    %3 = vector.load %arg3[%c0_6, %c0_7] : memref<1x8xf32, #tpu.memory_space<vmem>>, vector<1x8xf32>
    %cst = arith.constant 0.000000e+00 : f32
    %4 = vector.broadcast %cst : f32 to vector<1x25x8xf32>
    %c0_8 = arith.constant 0 : index
    %c0_9 = arith.constant 0 : index
    %c0_10 = arith.constant 0 : index
    %5 = vector.load %arg11[%c0_8, %c0_9, %c0_10] : memref<18x25x8xf32, #tpu.memory_space<vmem>>, vector<1x25x8xf32>
    tpu.vector_store %arg11[%c0_8, %c0_9, %c0_10], %4 {strides = array<i32>} : memref<18x25x8xf32, #tpu.memory_space<vmem>>, vector<1x25x8xf32>,
    %c17 = arith.constant 17 : index
    %c0_11 = arith.constant 0 : index
    %c0_12 = arith.constant 0 : index
    %6 = vector.load %arg11[%c17, %c0_11, %c0_12] : memref<18x25x8xf32, #tpu.memory_space<vmem>>, vector<1x25x8xf32>
    tpu.vector_store %arg11[%c17, %c0_11, %c0_12], %4 {strides = array<i32>} : memref<18x25x8xf32, #tpu.memory_space<vmem>>, vector<1x25x8xf32>,
    %cst_13 = arith.constant 0.000000e+00 : f32
    %7 = vector.broadcast %cst_13 : f32 to vector<16x1x8xf32>
    %c1 = arith.constant 1 : index
    %c7 = arith.constant 7 : index
    %c0_14 = arith.constant 0 : index
    %8 = vector.load %arg11[%c1, %c7, %c0_14] : memref<18x25x8xf32, #tpu.memory_space<vmem>>, vector<16x1x8xf32>
    tpu.vector_store %arg11[%c1, %c7, %c0_14], %7 {strides = array<i32>} : memref<18x25x8xf32, #tpu.memory_space<vmem>>, vector<16x1x8xf32>,
    %cst_15 = arith.constant 0.000000e+00 : f32
    %9 = vector.broadcast %cst_15 : f32 to vector<16x1x8xf32>
    %c1_16 = arith.constant 1 : index
    %c24 = arith.constant 24 : index
    %c0_17 = arith.constant 0 : index
    %10 = vector.load %arg11[%c1_16, %c24, %c0_17] : memref<18x25x8xf32, #tpu.memory_space<vmem>>, vector<16x1x8xf32>
    tpu.vector_store %arg11[%c1_16, %c24, %c0_17], %9 {strides = array<i32>} : memref<18x25x8xf32, #tpu.memory_space<vmem>>, vector<16x1x8xf32>,
    %c0_18 = arith.constant 0 : index
    %c0_19 = arith.constant 0 : index
    %c0_20 = arith.constant 0 : index
    %c0_21 = arith.constant 0 : index
    %11 = vector.load %arg1[%c0_18, %c0_19, %c0_20, %c0_21] : memref<1x16x16x8xf32, #tpu.memory_space<vmem>>, vector<1x8x16x8xf32>
    %12 = vector.shape_cast %11 : vector<1x8x16x8xf32> to vector<8x16x8xf32>
    %c1_22 = arith.constant 1 : index
    %c8 = arith.constant 8 : index
    %c0_23 = arith.constant 0 : index
    %13 = vector.load %arg11[%c1_22, %c8, %c0_23] : memref<18x25x8xf32, #tpu.memory_space<vmem>>, vector<8x16x8xf32>
    tpu.vector_store %arg11[%c1_22, %c8, %c0_23], %12 {strides = array<i32>} : memref<18x25x8xf32, #tpu.memory_space<vmem>>, vector<8x16x8xf32>,
    %c0_24 = arith.constant 0 : index
    %c8_25 = arith.constant 8 : index
    %c0_26 = arith.constant 0 : index
    %c0_27 = arith.constant 0 : index
    %14 = vector.load %arg1[%c0_24, %c8_25, %c0_26, %c0_27] : memref<1x16x16x8xf32, #tpu.memory_space<vmem>>, vector<1x8x16x8xf32>
    %15 = vector.shape_cast %14 : vector<1x8x16x8xf32> to vector<8x16x8xf32>
    %c9 = arith.constant 9 : index
    %c8_28 = arith.constant 8 : index
    %c0_29 = arith.constant 0 : index
    %16 = vector.load %arg11[%c9, %c8_28, %c0_29] : memref<18x25x8xf32, #tpu.memory_space<vmem>>, vector<8x16x8xf32>
    tpu.vector_store %arg11[%c9, %c8_28, %c0_29], %15 {strides = array<i32>} : memref<18x25x8xf32, #tpu.memory_space<vmem>>, vector<8x16x8xf32>,
    %c0_30 = arith.constant 0 : index
    %c0_31 = arith.constant 0 : index
    %c0_32 = arith.constant 0 : index
    %17 = vector.load %arg6[%c0_30, %c0_31, %c0_32] : memref<3x3x32xf32, #tpu.memory_space<vmem>>, vector<3x3x32xf32>
    %c0_33 = arith.constant 0 : index
    %c0_34 = arith.constant 0 : index
    %18 = vector.load %arg7[%c0_33, %c0_34] : memref<1x32xf32, #tpu.memory_space<vmem>>, vector<1x32xf32>
    %cst_35 = arith.constant 0.000000e+00 : f32
    %19 = vector.broadcast %cst_35 : f32 to vector<1x25x32xf32>
    %c0_36 = arith.constant 0 : index
    %c0_37 = arith.constant 0 : index
    %c0_38 = arith.constant 0 : index
    %20 = vector.load %arg12[%c0_36, %c0_37, %c0_38] : memref<18x25x32xf32, #tpu.memory_space<vmem>>, vector<1x25x32xf32>
    tpu.vector_store %arg12[%c0_36, %c0_37, %c0_38], %19 {strides = array<i32>} : memref<18x25x32xf32, #tpu.memory_space<vmem>>, vector<1x25x32xf32>,
    %c17_39 = arith.constant 17 : index
    %c0_40 = arith.constant 0 : index
    %c0_41 = arith.constant 0 : index
    %21 = vector.load %arg12[%c17_39, %c0_40, %c0_41] : memref<18x25x32xf32, #tpu.memory_space<vmem>>, vector<1x25x32xf32>
    tpu.vector_store %arg12[%c17_39, %c0_40, %c0_41], %19 {strides = array<i32>} : memref<18x25x32xf32, #tpu.memory_space<vmem>>, vector<1x25x32xf32>,
    %cst_42 = arith.constant 0.000000e+00 : f32
    %22 = vector.broadcast %cst_42 : f32 to vector<16x1x32xf32>
    %c1_43 = arith.constant 1 : index
    %c7_44 = arith.constant 7 : index
    %c0_45 = arith.constant 0 : index
    %23 = vector.load %arg12[%c1_43, %c7_44, %c0_45] : memref<18x25x32xf32, #tpu.memory_space<vmem>>, vector<16x1x32xf32>
    tpu.vector_store %arg12[%c1_43, %c7_44, %c0_45], %22 {strides = array<i32>} : memref<18x25x32xf32, #tpu.memory_space<vmem>>, vector<16x1x32xf32>,
    %cst_46 = arith.constant 0.000000e+00 : f32
    %24 = vector.broadcast %cst_46 : f32 to vector<16x1x32xf32>
    %c1_47 = arith.constant 1 : index
    %c24_48 = arith.constant 24 : index
    %c0_49 = arith.constant 0 : index
    %25 = vector.load %arg12[%c1_47, %c24_48, %c0_49] : memref<18x25x32xf32, #tpu.memory_space<vmem>>, vector<16x1x32xf32>
    tpu.vector_store %arg12[%c1_47, %c24_48, %c0_49], %24 {strides = array<i32>} : memref<18x25x32xf32, #tpu.memory_space<vmem>>, vector<16x1x32xf32>,
    %c0_50 = arith.constant 0 : index
    %c7_51 = arith.constant 7 : index
    %c0_52 = arith.constant 0 : index
    %26 = vector.load %arg11[%c0_50, %c7_51, %c0_52] : memref<18x25x8xf32, #tpu.memory_space<vmem>>, vector<8x16x8xf32>
    %27 = vector.extract_strided_slice %2 {offsets = [0, 0, 0], sizes = [1, 1, 8], strides = [1, 1, 1]} : vector<3x3x8xf32> to vector<1x1x8xf32>
    %28 = vector.broadcast %27 : vector<1x1x8xf32> to vector<8x16x8xf32>
    %29 = arith.mulf %26, %28 : vector<8x16x8xf32>
    %c0_53 = arith.constant 0 : index
    %c8_54 = arith.constant 8 : index
    %c0_55 = arith.constant 0 : index
    %30 = vector.load %arg11[%c0_53, %c8_54, %c0_55] : memref<18x25x8xf32, #tpu.memory_space<vmem>>, vector<8x16x8xf32>
    %31 = vector.extract_strided_slice %2 {offsets = [0, 1, 0], sizes = [1, 1, 8], strides = [1, 1, 1]} : vector<3x3x8xf32> to vector<1x1x8xf32>
    %32 = vector.broadcast %31 : vector<1x1x8xf32> to vector<8x16x8xf32>
    %33 = arith.mulf %30, %32 : vector<8x16x8xf32>
    %34 = arith.addf %29, %33 : vector<8x16x8xf32>
    %c0_56 = arith.constant 0 : index
    %c9_57 = arith.constant 9 : index
    %c0_58 = arith.constant 0 : index
    %35 = vector.load %arg11[%c0_56, %c9_57, %c0_58] : memref<18x25x8xf32, #tpu.memory_space<vmem>>, vector<8x16x8xf32>
    %36 = vector.extract_strided_slice %2 {offsets = [0, 2, 0], sizes = [1, 1, 8], strides = [1, 1, 1]} : vector<3x3x8xf32> to vector<1x1x8xf32>
    %37 = vector.broadcast %36 : vector<1x1x8xf32> to vector<8x16x8xf32>
    %38 = arith.mulf %35, %37 : vector<8x16x8xf32>
    %39 = arith.addf %34, %38 : vector<8x16x8xf32>
    %c1_59 = arith.constant 1 : index
    %c7_60 = arith.constant 7 : index
    %c0_61 = arith.constant 0 : index
    %40 = vector.load %arg11[%c1_59, %c7_60, %c0_61] : memref<18x25x8xf32, #tpu.memory_space<vmem>>, vector<8x16x8xf32>
    %41 = vector.extract_strided_slice %2 {offsets = [1, 0, 0], sizes = [1, 1, 8], strides = [1, 1, 1]} : vector<3x3x8xf32> to vector<1x1x8xf32>
    %42 = vector.broadcast %41 : vector<1x1x8xf32> to vector<8x16x8xf32>
    %43 = arith.mulf %40, %42 : vector<8x16x8xf32>
    %44 = arith.addf %39, %43 : vector<8x16x8xf32>
    %c1_62 = arith.constant 1 : index
    %c8_63 = arith.constant 8 : index
    %c0_64 = arith.constant 0 : index
    %45 = vector.load %arg11[%c1_62, %c8_63, %c0_64] : memref<18x25x8xf32, #tpu.memory_space<vmem>>, vector<8x16x8xf32>
    %46 = vector.extract_strided_slice %2 {offsets = [1, 1, 0], sizes = [1, 1, 8], strides = [1, 1, 1]} : vector<3x3x8xf32> to vector<1x1x8xf32>
    %47 = vector.broadcast %46 : vector<1x1x8xf32> to vector<8x16x8xf32>
    %48 = arith.mulf %45, %47 : vector<8x16x8xf32>
    %49 = arith.addf %44, %48 : vector<8x16x8xf32>
    %c1_65 = arith.constant 1 : index
    %c9_66 = arith.constant 9 : index
    %c0_67 = arith.constant 0 : index
    %50 = vector.load %arg11[%c1_65, %c9_66, %c0_67] : memref<18x25x8xf32, #tpu.memory_space<vmem>>, vector<8x16x8xf32>
    %51 = vector.extract_strided_slice %2 {offsets = [1, 2, 0], sizes = [1, 1, 8], strides = [1, 1, 1]} : vector<3x3x8xf32> to vector<1x1x8xf32>
    %52 = vector.broadcast %51 : vector<1x1x8xf32> to vector<8x16x8xf32>
    %53 = arith.mulf %50, %52 : vector<8x16x8xf32>
    %54 = arith.addf %49, %53 : vector<8x16x8xf32>
    %c2 = arith.constant 2 : index
    %c7_68 = arith.constant 7 : index
    %c0_69 = arith.constant 0 : index
    %55 = vector.load %arg11[%c2, %c7_68, %c0_69] : memref<18x25x8xf32, #tpu.memory_space<vmem>>, vector<8x16x8xf32>
    %56 = vector.extract_strided_slice %2 {offsets = [2, 0, 0], sizes = [1, 1, 8], strides = [1, 1, 1]} : vector<3x3x8xf32> to vector<1x1x8xf32>
    %57 = vector.broadcast %56 : vector<1x1x8xf32> to vector<8x16x8xf32>
    %58 = arith.mulf %55, %57 : vector<8x16x8xf32>
    %59 = arith.addf %54, %58 : vector<8x16x8xf32>
    %c2_70 = arith.constant 2 : index
    %c8_71 = arith.constant 8 : index
    %c0_72 = arith.constant 0 : index
    %60 = vector.load %arg11[%c2_70, %c8_71, %c0_72] : memref<18x25x8xf32, #tpu.memory_space<vmem>>, vector<8x16x8xf32>
    %61 = vector.extract_strided_slice %2 {offsets = [2, 1, 0], sizes = [1, 1, 8], strides = [1, 1, 1]} : vector<3x3x8xf32> to vector<1x1x8xf32>
    %62 = vector.broadcast %61 : vector<1x1x8xf32> to vector<8x16x8xf32>
    %63 = arith.mulf %60, %62 : vector<8x16x8xf32>
    %64 = arith.addf %59, %63 : vector<8x16x8xf32>
    %c2_73 = arith.constant 2 : index
    %c9_74 = arith.constant 9 : index
    %c0_75 = arith.constant 0 : index
    %65 = vector.load %arg11[%c2_73, %c9_74, %c0_75] : memref<18x25x8xf32, #tpu.memory_space<vmem>>, vector<8x16x8xf32>
    %66 = vector.extract_strided_slice %2 {offsets = [2, 2, 0], sizes = [1, 1, 8], strides = [1, 1, 1]} : vector<3x3x8xf32> to vector<1x1x8xf32>
    %67 = vector.broadcast %66 : vector<1x1x8xf32> to vector<8x16x8xf32>
    %68 = arith.mulf %65, %67 : vector<8x16x8xf32>
    %69 = arith.addf %64, %68 : vector<8x16x8xf32>
    %70 = vector.shape_cast %3 : vector<1x8xf32> to vector<1x1x8xf32>
    %71 = vector.broadcast %70 : vector<1x1x8xf32> to vector<8x16x8xf32>
    %72 = arith.addf %69, %71 : vector<8x16x8xf32>
    %73 = vector.shape_cast %72 : vector<8x16x8xf32> to vector<128x8xf32>
    %74 = arith.truncf %73 : vector<128x8xf32> to vector<128x8xbf16>
    %cst_76 = arith.constant dense<0.000000e+00> : vector<128x32xf32>
    %75 = tpu.matmul %74, %0, %cst_76 {dimension_numbers = #tpu.dot_dimension_numbers<[1], [0], [0], [1], [0, 0, 1, 1], [], []>} : vector<128x8xbf16>, vector<8x32xbf16>, vector<128x32xf32> -> vector<128x32xf32>
    %76 = vector.broadcast %1 : vector<1x32xf32> to vector<128x32xf32>
    %77 = arith.addf %75, %76 : vector<128x32xf32>
    %cst_77 = arith.constant 0.000000e+00 : f32
    %cst_78 = arith.constant 6.000000e+00 : f32
    %78 = vector.broadcast %cst_77 : f32 to vector<128x32xf32>
    %79 = arith.maximumf %78, %77 : vector<128x32xf32>
    %80 = vector.broadcast %cst_78 : f32 to vector<128x32xf32>
    %81 = arith.minimumf %80, %79 : vector<128x32xf32>
    %82 = vector.shape_cast %81 : vector<128x32xf32> to vector<8x16x32xf32>
    %c1_79 = arith.constant 1 : index
    %c8_80 = arith.constant 8 : index
    %c0_81 = arith.constant 0 : index
    %83 = vector.load %arg12[%c1_79, %c8_80, %c0_81] : memref<18x25x32xf32, #tpu.memory_space<vmem>>, vector<8x16x32xf32>
    tpu.vector_store %arg12[%c1_79, %c8_80, %c0_81], %82 {strides = array<i32>} : memref<18x25x32xf32, #tpu.memory_space<vmem>>, vector<8x16x32xf32>,
    %c8_82 = arith.constant 8 : index
    %c7_83 = arith.constant 7 : index
    %c0_84 = arith.constant 0 : index
    %84 = vector.load %arg11[%c8_82, %c7_83, %c0_84] : memref<18x25x8xf32, #tpu.memory_space<vmem>>, vector<8x16x8xf32>
    %85 = vector.extract_strided_slice %2 {offsets = [0, 0, 0], sizes = [1, 1, 8], strides = [1, 1, 1]} : vector<3x3x8xf32> to vector<1x1x8xf32>
    %86 = vector.broadcast %85 : vector<1x1x8xf32> to vector<8x16x8xf32>
    %87 = arith.mulf %84, %86 : vector<8x16x8xf32>
    %c8_85 = arith.constant 8 : index
    %c8_86 = arith.constant 8 : index
    %c0_87 = arith.constant 0 : index
    %88 = vector.load %arg11[%c8_85, %c8_86, %c0_87] : memref<18x25x8xf32, #tpu.memory_space<vmem>>, vector<8x16x8xf32>
    %89 = vector.extract_strided_slice %2 {offsets = [0, 1, 0], sizes = [1, 1, 8], strides = [1, 1, 1]} : vector<3x3x8xf32> to vector<1x1x8xf32>
    %90 = vector.broadcast %89 : vector<1x1x8xf32> to vector<8x16x8xf32>
    %91 = arith.mulf %88, %90 : vector<8x16x8xf32>
    %92 = arith.addf %87, %91 : vector<8x16x8xf32>
    %c8_88 = arith.constant 8 : index
    %c9_89 = arith.constant 9 : index
    %c0_90 = arith.constant 0 : index
    %93 = vector.load %arg11[%c8_88, %c9_89, %c0_90] : memref<18x25x8xf32, #tpu.memory_space<vmem>>, vector<8x16x8xf32>
    %94 = vector.extract_strided_slice %2 {offsets = [0, 2, 0], sizes = [1, 1, 8], strides = [1, 1, 1]} : vector<3x3x8xf32> to vector<1x1x8xf32>
    %95 = vector.broadcast %94 : vector<1x1x8xf32> to vector<8x16x8xf32>
    %96 = arith.mulf %93, %95 : vector<8x16x8xf32>
    %97 = arith.addf %92, %96 : vector<8x16x8xf32>
    %c9_91 = arith.constant 9 : index
    %c7_92 = arith.constant 7 : index
    %c0_93 = arith.constant 0 : index
    %98 = vector.load %arg11[%c9_91, %c7_92, %c0_93] : memref<18x25x8xf32, #tpu.memory_space<vmem>>, vector<8x16x8xf32>
    %99 = vector.extract_strided_slice %2 {offsets = [1, 0, 0], sizes = [1, 1, 8], strides = [1, 1, 1]} : vector<3x3x8xf32> to vector<1x1x8xf32>
    %100 = vector.broadcast %99 : vector<1x1x8xf32> to vector<8x16x8xf32>
    %101 = arith.mulf %98, %100 : vector<8x16x8xf32>
    %102 = arith.addf %97, %101 : vector<8x16x8xf32>
    %c9_94 = arith.constant 9 : index
    %c8_95 = arith.constant 8 : index
    %c0_96 = arith.constant 0 : index
    %103 = vector.load %arg11[%c9_94, %c8_95, %c0_96] : memref<18x25x8xf32, #tpu.memory_space<vmem>>, vector<8x16x8xf32>
    %104 = vector.extract_strided_slice %2 {offsets = [1, 1, 0], sizes = [1, 1, 8], strides = [1, 1, 1]} : vector<3x3x8xf32> to vector<1x1x8xf32>
    %105 = vector.broadcast %104 : vector<1x1x8xf32> to vector<8x16x8xf32>
    %106 = arith.mulf %103, %105 : vector<8x16x8xf32>
    %107 = arith.addf %102, %106 : vector<8x16x8xf32>
    %c9_97 = arith.constant 9 : index
    %c9_98 = arith.constant 9 : index
    %c0_99 = arith.constant 0 : index
    %108 = vector.load %arg11[%c9_97, %c9_98, %c0_99] : memref<18x25x8xf32, #tpu.memory_space<vmem>>, vector<8x16x8xf32>
    %109 = vector.extract_strided_slice %2 {offsets = [1, 2, 0], sizes = [1, 1, 8], strides = [1, 1, 1]} : vector<3x3x8xf32> to vector<1x1x8xf32>
    %110 = vector.broadcast %109 : vector<1x1x8xf32> to vector<8x16x8xf32>
    %111 = arith.mulf %108, %110 : vector<8x16x8xf32>
    %112 = arith.addf %107, %111 : vector<8x16x8xf32>
    %c10 = arith.constant 10 : index
    %c7_100 = arith.constant 7 : index
    %c0_101 = arith.constant 0 : index
    %113 = vector.load %arg11[%c10, %c7_100, %c0_101] : memref<18x25x8xf32, #tpu.memory_space<vmem>>, vector<8x16x8xf32>
    %114 = vector.extract_strided_slice %2 {offsets = [2, 0, 0], sizes = [1, 1, 8], strides = [1, 1, 1]} : vector<3x3x8xf32> to vector<1x1x8xf32>
    %115 = vector.broadcast %114 : vector<1x1x8xf32> to vector<8x16x8xf32>
    %116 = arith.mulf %113, %115 : vector<8x16x8xf32>
    %117 = arith.addf %112, %116 : vector<8x16x8xf32>
    %c10_102 = arith.constant 10 : index
    %c8_103 = arith.constant 8 : index
    %c0_104 = arith.constant 0 : index
    %118 = vector.load %arg11[%c10_102, %c8_103, %c0_104] : memref<18x25x8xf32, #tpu.memory_space<vmem>>, vector<8x16x8xf32>
    %119 = vector.extract_strided_slice %2 {offsets = [2, 1, 0], sizes = [1, 1, 8], strides = [1, 1, 1]} : vector<3x3x8xf32> to vector<1x1x8xf32>
    %120 = vector.broadcast %119 : vector<1x1x8xf32> to vector<8x16x8xf32>
    %121 = arith.mulf %118, %120 : vector<8x16x8xf32>
    %122 = arith.addf %117, %121 : vector<8x16x8xf32>
    %c10_105 = arith.constant 10 : index
    %c9_106 = arith.constant 9 : index
    %c0_107 = arith.constant 0 : index
    %123 = vector.load %arg11[%c10_105, %c9_106, %c0_107] : memref<18x25x8xf32, #tpu.memory_space<vmem>>, vector<8x16x8xf32>
    %124 = vector.extract_strided_slice %2 {offsets = [2, 2, 0], sizes = [1, 1, 8], strides = [1, 1, 1]} : vector<3x3x8xf32> to vector<1x1x8xf32>
    %125 = vector.broadcast %124 : vector<1x1x8xf32> to vector<8x16x8xf32>
    %126 = arith.mulf %123, %125 : vector<8x16x8xf32>
    %127 = arith.addf %122, %126 : vector<8x16x8xf32>
    %128 = vector.shape_cast %3 : vector<1x8xf32> to vector<1x1x8xf32>
    %129 = vector.broadcast %128 : vector<1x1x8xf32> to vector<8x16x8xf32>
    %130 = arith.addf %127, %129 : vector<8x16x8xf32>
    %131 = vector.shape_cast %130 : vector<8x16x8xf32> to vector<128x8xf32>
    %132 = arith.truncf %131 : vector<128x8xf32> to vector<128x8xbf16>
    %cst_108 = arith.constant dense<0.000000e+00> : vector<128x32xf32>
    %133 = tpu.matmul %132, %0, %cst_108 {dimension_numbers = #tpu.dot_dimension_numbers<[1], [0], [0], [1], [0, 0, 1, 1], [], []>} : vector<128x8xbf16>, vector<8x32xbf16>, vector<128x32xf32> -> vector<128x32xf32>
    %134 = vector.broadcast %1 : vector<1x32xf32> to vector<128x32xf32>
    %135 = arith.addf %133, %134 : vector<128x32xf32>
    %cst_109 = arith.constant 0.000000e+00 : f32
    %cst_110 = arith.constant 6.000000e+00 : f32
    %136 = vector.broadcast %cst_109 : f32 to vector<128x32xf32>
    %137 = arith.maximumf %136, %135 : vector<128x32xf32>
    %138 = vector.broadcast %cst_110 : f32 to vector<128x32xf32>
    %139 = arith.minimumf %138, %137 : vector<128x32xf32>
    %140 = vector.shape_cast %139 : vector<128x32xf32> to vector<8x16x32xf32>
    %c9_111 = arith.constant 9 : index
    %c8_112 = arith.constant 8 : index
    %c0_113 = arith.constant 0 : index
    %141 = vector.load %arg12[%c9_111, %c8_112, %c0_113] : memref<18x25x32xf32, #tpu.memory_space<vmem>>, vector<8x16x32xf32>
    tpu.vector_store %arg12[%c9_111, %c8_112, %c0_113], %140 {strides = array<i32>} : memref<18x25x32xf32, #tpu.memory_space<vmem>>, vector<8x16x32xf32>,
    %c0_114 = arith.constant 0 : index
    %c7_115 = arith.constant 7 : index
    %c0_116 = arith.constant 0 : index
    %142 = tpu.strided_load %arg12[%c0_114, %c7_115, %c0_116] {strides = array<i32: 2, 2, 1>} : memref<18x25x32xf32, #tpu.memory_space<vmem>>, vector<8x8x32xf32>
    %143 = vector.extract_strided_slice %17 {offsets = [0, 0, 0], sizes = [1, 1, 32], strides = [1, 1, 1]} : vector<3x3x32xf32> to vector<1x1x32xf32>
    %144 = vector.broadcast %143 : vector<1x1x32xf32> to vector<8x8x32xf32>
    %145 = arith.mulf %142, %144 : vector<8x8x32xf32>
    %c0_117 = arith.constant 0 : index
    %c8_118 = arith.constant 8 : index
    %c0_119 = arith.constant 0 : index
    %146 = tpu.strided_load %arg12[%c0_117, %c8_118, %c0_119] {strides = array<i32: 2, 2, 1>} : memref<18x25x32xf32, #tpu.memory_space<vmem>>, vector<8x8x32xf32>
    %147 = vector.extract_strided_slice %17 {offsets = [0, 1, 0], sizes = [1, 1, 32], strides = [1, 1, 1]} : vector<3x3x32xf32> to vector<1x1x32xf32>
    %148 = vector.broadcast %147 : vector<1x1x32xf32> to vector<8x8x32xf32>
    %149 = arith.mulf %146, %148 : vector<8x8x32xf32>
    %150 = arith.addf %145, %149 : vector<8x8x32xf32>
    %c0_120 = arith.constant 0 : index
    %c9_121 = arith.constant 9 : index
    %c0_122 = arith.constant 0 : index
    %151 = tpu.strided_load %arg12[%c0_120, %c9_121, %c0_122] {strides = array<i32: 2, 2, 1>} : memref<18x25x32xf32, #tpu.memory_space<vmem>>, vector<8x8x32xf32>
    %152 = vector.extract_strided_slice %17 {offsets = [0, 2, 0], sizes = [1, 1, 32], strides = [1, 1, 1]} : vector<3x3x32xf32> to vector<1x1x32xf32>
    %153 = vector.broadcast %152 : vector<1x1x32xf32> to vector<8x8x32xf32>
    %154 = arith.mulf %151, %153 : vector<8x8x32xf32>
    %155 = arith.addf %150, %154 : vector<8x8x32xf32>
    %c1_123 = arith.constant 1 : index
    %c7_124 = arith.constant 7 : index
    %c0_125 = arith.constant 0 : index
    %156 = tpu.strided_load %arg12[%c1_123, %c7_124, %c0_125] {strides = array<i32: 2, 2, 1>} : memref<18x25x32xf32, #tpu.memory_space<vmem>>, vector<8x8x32xf32>
    %157 = vector.extract_strided_slice %17 {offsets = [1, 0, 0], sizes = [1, 1, 32], strides = [1, 1, 1]} : vector<3x3x32xf32> to vector<1x1x32xf32>
    %158 = vector.broadcast %157 : vector<1x1x32xf32> to vector<8x8x32xf32>
    %159 = arith.mulf %156, %158 : vector<8x8x32xf32>
    %160 = arith.addf %155, %159 : vector<8x8x32xf32>
    %c1_126 = arith.constant 1 : index
    %c8_127 = arith.constant 8 : index
    %c0_128 = arith.constant 0 : index
    %161 = tpu.strided_load %arg12[%c1_126, %c8_127, %c0_128] {strides = array<i32: 2, 2, 1>} : memref<18x25x32xf32, #tpu.memory_space<vmem>>, vector<8x8x32xf32>
    %162 = vector.extract_strided_slice %17 {offsets = [1, 1, 0], sizes = [1, 1, 32], strides = [1, 1, 1]} : vector<3x3x32xf32> to vector<1x1x32xf32>
    %163 = vector.broadcast %162 : vector<1x1x32xf32> to vector<8x8x32xf32>
    %164 = arith.mulf %161, %163 : vector<8x8x32xf32>
    %165 = arith.addf %160, %164 : vector<8x8x32xf32>
    %c1_129 = arith.constant 1 : index
    %c9_130 = arith.constant 9 : index
    %c0_131 = arith.constant 0 : index
    %166 = tpu.strided_load %arg12[%c1_129, %c9_130, %c0_131] {strides = array<i32: 2, 2, 1>} : memref<18x25x32xf32, #tpu.memory_space<vmem>>, vector<8x8x32xf32>
    %167 = vector.extract_strided_slice %17 {offsets = [1, 2, 0], sizes = [1, 1, 32], strides = [1, 1, 1]} : vector<3x3x32xf32> to vector<1x1x32xf32>
    %168 = vector.broadcast %167 : vector<1x1x32xf32> to vector<8x8x32xf32>
    %169 = arith.mulf %166, %168 : vector<8x8x32xf32>
    %170 = arith.addf %165, %169 : vector<8x8x32xf32>
    %c2_132 = arith.constant 2 : index
    %c7_133 = arith.constant 7 : index
    %c0_134 = arith.constant 0 : index
    %171 = tpu.strided_load %arg12[%c2_132, %c7_133, %c0_134] {strides = array<i32: 2, 2, 1>} : memref<18x25x32xf32, #tpu.memory_space<vmem>>, vector<8x8x32xf32>
    %172 = vector.extract_strided_slice %17 {offsets = [2, 0, 0], sizes = [1, 1, 32], strides = [1, 1, 1]} : vector<3x3x32xf32> to vector<1x1x32xf32>
    %173 = vector.broadcast %172 : vector<1x1x32xf32> to vector<8x8x32xf32>
    %174 = arith.mulf %171, %173 : vector<8x8x32xf32>
    %175 = arith.addf %170, %174 : vector<8x8x32xf32>
    %c2_135 = arith.constant 2 : index
    %c8_136 = arith.constant 8 : index
    %c0_137 = arith.constant 0 : index
    %176 = tpu.strided_load %arg12[%c2_135, %c8_136, %c0_137] {strides = array<i32: 2, 2, 1>} : memref<18x25x32xf32, #tpu.memory_space<vmem>>, vector<8x8x32xf32>
    %177 = vector.extract_strided_slice %17 {offsets = [2, 1, 0], sizes = [1, 1, 32], strides = [1, 1, 1]} : vector<3x3x32xf32> to vector<1x1x32xf32>
    %178 = vector.broadcast %177 : vector<1x1x32xf32> to vector<8x8x32xf32>
    %179 = arith.mulf %176, %178 : vector<8x8x32xf32>
    %180 = arith.addf %175, %179 : vector<8x8x32xf32>
    %c2_138 = arith.constant 2 : index
    %c9_139 = arith.constant 9 : index
    %c0_140 = arith.constant 0 : index
    %181 = tpu.strided_load %arg12[%c2_138, %c9_139, %c0_140] {strides = array<i32: 2, 2, 1>} : memref<18x25x32xf32, #tpu.memory_space<vmem>>, vector<8x8x32xf32>
    %182 = vector.extract_strided_slice %17 {offsets = [2, 2, 0], sizes = [1, 1, 32], strides = [1, 1, 1]} : vector<3x3x32xf32> to vector<1x1x32xf32>
    %183 = vector.broadcast %182 : vector<1x1x32xf32> to vector<8x8x32xf32>
    %184 = arith.mulf %181, %183 : vector<8x8x32xf32>
    %185 = arith.addf %180, %184 : vector<8x8x32xf32>
    %186 = vector.shape_cast %18 : vector<1x32xf32> to vector<1x1x32xf32>
    %187 = vector.broadcast %186 : vector<1x1x32xf32> to vector<8x8x32xf32>
    %188 = arith.addf %185, %187 : vector<8x8x32xf32>
    %cst_141 = arith.constant 0.000000e+00 : f32
    %cst_142 = arith.constant 6.000000e+00 : f32
    %189 = vector.broadcast %cst_141 : f32 to vector<8x8x32xf32>
    %190 = arith.maximumf %189, %188 : vector<8x8x32xf32>
    %191 = vector.broadcast %cst_142 : f32 to vector<8x8x32xf32>
    %192 = arith.minimumf %191, %190 : vector<8x8x32xf32>
    %193 = vector.shape_cast %192 : vector<8x8x32xf32> to vector<64x32xf32>
    %194 = arith.truncf %193 : vector<64x32xf32> to vector<64x32xbf16>
    %c0_143 = arith.constant 0 : index
    %c0_144 = arith.constant 0 : index
    %195 = vector.load %arg13[%c0_143, %c0_144] : memref<64x32xbf16, #tpu.memory_space<vmem>>, vector<64x32xbf16>
    tpu.vector_store %arg13[%c0_143, %c0_144], %194 {strides = array<i32>} : memref<64x32xbf16, #tpu.memory_space<vmem>>, vector<64x32xbf16>,
    %c0_145 = arith.constant 0 : index
    %c0_146 = arith.constant 0 : index
    %196 = vector.load %arg8[%c0_145, %c0_146] : memref<16x32xbf16, #tpu.memory_space<vmem>>, vector<16x32xbf16>
    %c0_147 = arith.constant 0 : index
    %c0_148 = arith.constant 0 : index
    %197 = vector.load %arg9[%c0_147, %c0_148] : memref<16x1xf32, #tpu.memory_space<vmem>>, vector<16x1xf32>
    %c0_149 = arith.constant 0 : index
    %c0_150 = arith.constant 0 : index
    %198 = vector.load %arg13[%c0_149, %c0_150] : memref<64x32xbf16, #tpu.memory_space<vmem>>, vector<64x32xbf16>
    %cst_151 = arith.constant dense<0.000000e+00> : vector<16x64xf32>
    %199 = tpu.matmul %196, %198, %cst_151 {dimension_numbers = #tpu.dot_dimension_numbers<[1], [1], [0], [0], [0, 0, 1, 0], [], []>} : vector<16x32xbf16>, vector<64x32xbf16>, vector<16x64xf32> -> vector<16x64xf32>
    %200 = vector.broadcast %197 : vector<16x1xf32> to vector<16x64xf32>
    %201 = arith.addf %199, %200 : vector<16x64xf32>
    %c0_152 = arith.constant 0 : index
    %c0_153 = arith.constant 0 : index
    %c0_154 = arith.constant 0 : index
    %202 = vector.load %arg10[%c0_152, %c0_153, %c0_154] : memref<1x16x64xf32, #tpu.memory_space<vmem>>, vector<1x16x64xf32>
    %203 = vector.shape_cast %202 : vector<1x16x64xf32> to vector<16x64xf32>
    %204 = vector.shape_cast %201 : vector<16x64xf32> to vector<1x16x64xf32>
    tpu.vector_store %arg10[%c0_152, %c0_153, %c0_154], %204 {strides = array<i32>} : memref<1x16x64xf32, #tpu.memory_space<vmem>>, vector<1x16x64xf32>,
    return
  }
  func.func @transform_0(%arg0: i32) -> (i32, i32, i32, i32) {
    %c0_i32 = arith.constant 0 : i32
    %c0_i32_0 = arith.constant 0 : i32
    %c0_i32_1 = arith.constant 0 : i32
    %c0_i32_2 = arith.constant 0 : i32
    return %arg0, %c0_i32, %c0_i32_0, %c0_i32_1 : i32, i32, i32, i32
  }
  func.func @transform_1(%arg0: i32) -> (i32, i32, i32) {
    %c0_i32 = arith.constant 0 : i32
    %c0_i32_0 = arith.constant 0 : i32
    %c0_i32_1 = arith.constant 0 : i32
    %c0_i32_2 = arith.constant 0 : i32
    return %c0_i32, %c0_i32_0, %c0_i32_1 : i32, i32, i32
  }
  func.func @transform_2(%arg0: i32) -> (i32, i32) {
    %c0_i32 = arith.constant 0 : i32
    %c0_i32_0 = arith.constant 0 : i32
    %c0_i32_1 = arith.constant 0 : i32
    return %c0_i32, %c0_i32_0 : i32, i32
  }
  func.func @transform_3(%arg0: i32) -> (i32, i32) {
    %c0_i32 = arith.constant 0 : i32
    %c0_i32_0 = arith.constant 0 : i32
    %c0_i32_1 = arith.constant 0 : i32
    return %c0_i32, %c0_i32_0 : i32, i32
  }
  func.func @transform_4(%arg0: i32) -> (i32, i32) {
    %c0_i32 = arith.constant 0 : i32
    %c0_i32_0 = arith.constant 0 : i32
    %c0_i32_1 = arith.constant 0 : i32
    return %c0_i32, %c0_i32_0 : i32, i32
  }
  func.func @transform_5(%arg0: i32) -> (i32, i32, i32) {
    %c0_i32 = arith.constant 0 : i32
    %c0_i32_0 = arith.constant 0 : i32
    %c0_i32_1 = arith.constant 0 : i32
    %c0_i32_2 = arith.constant 0 : i32
    return %c0_i32, %c0_i32_0, %c0_i32_1 : i32, i32, i32
  }
  func.func @transform_6(%arg0: i32) -> (i32, i32) {
    %c0_i32 = arith.constant 0 : i32
    %c0_i32_0 = arith.constant 0 : i32
    %c0_i32_1 = arith.constant 0 : i32
    return %c0_i32, %c0_i32_0 : i32, i32
  }
  func.func @transform_7(%arg0: i32) -> (i32, i32) {
    %c0_i32 = arith.constant 0 : i32
    %c0_i32_0 = arith.constant 0 : i32
    %c0_i32_1 = arith.constant 0 : i32
    return %c0_i32, %c0_i32_0 : i32, i32
  }
  func.func @transform_8(%arg0: i32) -> (i32, i32) {
    %c0_i32 = arith.constant 0 : i32
    %c0_i32_0 = arith.constant 0 : i32
    %c0_i32_1 = arith.constant 0 : i32
    return %c0_i32, %c0_i32_0 : i32, i32
  }
  func.func @transform_9(%arg0: i32) -> (i32, i32, i32) {
    %c0_i32 = arith.constant 0 : i32
    %c0_i32_0 = arith.constant 0 : i32
    %c0_i32_1 = arith.constant 0 : i32
    return %arg0, %c0_i32, %c0_i32_0 : i32, i32, i32
  }
}

</mosaic_0001>

<llo_original>
// kernel: tpu_custom_call.1
$region0: #{tpu_custom_call.1}
  #allocation0 [shape = 'u32[]', space=smem, size = 0x4, offset = 0x4, fixed_abs, tag = 'smem constant byte address 0x4 - core index']
  #allocation1 [shape = 'u32[72,128]{1,0:T(1,128)}', space=vmem, size = 0x9000, scoped, tag = 'internal scratch']
  #allocation2 [shape = 'f32[18,25,8]{2,1,0:T(8,128)}', space=vmem, size = 0x48000, scoped, tag = 'scratch operand']
  #allocation3 [shape = 'f32[18,25,32]{2,1,0:T(8,128)}', space=vmem, size = 0x48000, scoped, tag = 'scratch operand']
  #allocation4 [shape = 'bf16[64,32]{1,0:T(8,128)(2,1)}', space=vmem, size = 0x4000, scoped, tag = 'scratch operand']
  %s0 = inlined_call_operand.vmem [shape: f32[2,16,16,8], index: 0, kind: input, shape index: {}]
  %s1 = inlined_call_operand.vmem [shape: f32[3,3,8], index: 1, kind: input, shape index: {}]
  %s2 = inlined_call_operand.vmem [shape: f32[1,8], index: 2, kind: input, shape index: {}]
  %s3 = inlined_call_operand.vmem [shape: bf16[8,32], index: 3, kind: input, shape index: {}]
  %s4 = inlined_call_operand.vmem [shape: f32[1,32], index: 4, kind: input, shape index: {}]
  %s5 = inlined_call_operand.vmem [shape: f32[3,3,32], index: 5, kind: input, shape index: {}]
  %s6 = inlined_call_operand.vmem [shape: f32[1,32], index: 6, kind: input, shape index: {}]
  %s7 = inlined_call_operand.vmem [shape: bf16[16,32], index: 7, kind: input, shape index: {}]
  %s8 = inlined_call_operand.vmem [shape: f32[16,1], index: 8, kind: input, shape index: {}]
  %s9 = inlined_call_operand.hbm [shape: f32[2,16,64], index: 9, kind: output, shape index: {}]
  %s10 = sld [smem:[#allocation0]]
  $region69: #{tpu_custom_call.1} parent=0
    _
  %s12 = ssub.s32 1, %s10
  %s13 = scalar_select 0, %s12, %s10
  $region1: #{tpu_custom_call.1} parent=0
    #allocation5 [shape = 'u8[16384]{0}', space=vmem, size = 0x4000, scoped, tag = 'output window, operand 0']
    #allocation6 [shape = 's32[2]{0}', space=sflag, size = 0x8, scoped, tag = 'scoped memory for tpu_custom_call.1']
    %14 = vsyncpa [#allocation6], 0
    %s15 = scalar_lea.sflag [#allocation6], 1
    %16 = vsyncpa %s15, 0
    loop: start=0, step=1, limit=4
    $region2: #{tpu_custom_call.1} parent=1 // loop_pre_header
      _
    $region3: #{tpu_custom_call.1} parent=1 // loop_header
      %s18 = sphi 0, %s22
      %p19 = scmp.ge.s32.totalorder %s18, 4
      %s28 = sphi 0, %s30
      %s31 = sphi 0, %s28
      %s32 = sphi 0, %s31
      %s48 = sphi 0, %s32
      %s52 = sphi 0, %s52
      %s54 = sphi 0, %s52
      %s55 = sphi 0, %s54
      %s69 = sphi 0, %s55
      %s73 = sphi 0, %s73
      %s75 = sphi 0, %s73
      %s76 = sphi 0, %s75
      %s90 = sphi 0, %s76
      %s94 = sphi 0, %s94
      %s96 = sphi 0, %s94
      %s97 = sphi 0, %s96
      %s111 = sphi 0, %s97
      %s115 = sphi 0, %s115
      %s117 = sphi 0, %s115
      %s118 = sphi 0, %s117
      %s132 = sphi 0, %s118
      %s136 = sphi 0, %s136
      %s138 = sphi 0, %s136
      %s139 = sphi 0, %s138
      %s153 = sphi 0, %s139
      %s157 = sphi 0, %s157
      %s159 = sphi 0, %s157
      %s160 = sphi 0, %s159
      %s174 = sphi 0, %s160
      %s178 = sphi 0, %s178
      %s180 = sphi 0, %s178
      %s181 = sphi 0, %s180
      %s195 = sphi 0, %s181
      %s199 = sphi 0, %s199
      %s201 = sphi 0, %s199
      %s202 = sphi 0, %s201
      %s216 = sphi 0, %s202
      %s222 = sphi 0, %s224
      %s225 = sphi 0, %s222
      %s226 = sphi 0, %s225
      %s242 = sphi 0, %s226
    $region4: #{tpu_custom_call.1} parent=1 // loop_header_branch
      %21 = sbr.rel (%p19) target = $region8
    $region5: #{tpu_custom_call.1} parent=1 // loop_body
      %s23 = ssub.s32 %s18, 1
      %s24 = ssub.s32 %s18, 2
      %s25 = sadd.s32 %s18, 1
      %s26 = ssub.s32 %s18, %s25
      %p27 = scmp.eq.s32.totalorder %s26, 0
      %s29 = sadd.s32 %s28, 1
      %s30 = scalar_select %p27, %s28, %s29
      %p33 = pneg %p27
      %p34 = scmp.eq.s32.totalorder %s18, 1
      %p35 = por %p33, %p34
      %p36 = scmp.ne.s32.totalorder %s28, %s31
      %p37 = scmp.eq.s32.totalorder %s18, 0
      %p38 = por %p36, %p37
      %p39 = scmp.ne.s32.totalorder %s28, %s31
      %p40 = scmp.eq.s32.totalorder %s23, 1
      %p41 = por %p39, %p40
      %p42 = scmp.ne.s32.totalorder %s31, %s32
      %p43 = scmp.eq.s32.totalorder %s23, 0
      %p44 = por %p42, %p43
      %p45 = scmp.ne.s32.totalorder %s31, %s32
      %p46 = scmp.eq.s32.totalorder %s24, 1
      %p47 = por %p45, %p46
      %p49 = scmp.ne.s32.totalorder %s32, %s48
      %p50 = scmp.eq.s32.totalorder %s24, 0
      %p51 = por %p49, %p50
      %s53 = sadd.s32 %s52, 1
      %p56 = scmp.eq.s32.totalorder %s18, 1
      %p57 = scmp.ne.s32.totalorder %s52, %s54
      %p58 = scmp.eq.s32.totalorder %s18, 0
      %p59 = por %p57, %p58
      %p60 = scmp.ne.s32.totalorder %s52, %s54
      %p61 = scmp.eq.s32.totalorder %s23, 1
      %p62 = por %p60, %p61
      %p63 = scmp.ne.s32.totalorder %s54, %s55
      %p64 = scmp.eq.s32.totalorder %s23, 0
      %p65 = por %p63, %p64
      %p66 = scmp.ne.s32.totalorder %s54, %s55
      %p67 = scmp.eq.s32.totalorder %s24, 1
      %p68 = por %p66, %p67
      %p70 = scmp.ne.s32.totalorder %s55, %s69
      %p71 = scmp.eq.s32.totalorder %s24, 0
      %p72 = por %p70, %p71
      %s74 = sadd.s32 %s73, 1
      %p77 = scmp.eq.s32.totalorder %s18, 1
      %p78 = scmp.ne.s32.totalorder %s73, %s75
      %p79 = scmp.eq.s32.totalorder %s18, 0
      %p80 = por %p78, %p79
      %p81 = scmp.ne.s32.totalorder %s73, %s75
      %p82 = scmp.eq.s32.totalorder %s23, 1
      %p83 = por %p81, %p82
      %p84 = scmp.ne.s32.totalorder %s75, %s76
      %p85 = scmp.eq.s32.totalorder %s23, 0
      %p86 = por %p84, %p85
      %p87 = scmp.ne.s32.totalorder %s75, %s76
      %p88 = scmp.eq.s32.totalorder %s24, 1
      %p89 = por %p87, %p88
      %p91 = scmp.ne.s32.totalorder %s76, %s90
      %p92 = scmp.eq.s32.totalorder %s24, 0
      %p93 = por %p91, %p92
      %s95 = sadd.s32 %s94, 1
      %p98 = scmp.eq.s32.totalorder %s18, 1
      %p99 = scmp.ne.s32.totalorder %s94, %s96
      %p100 = scmp.eq.s32.totalorder %s18, 0
      %p101 = por %p99, %p100
      %p102 = scmp.ne.s32.totalorder %s94, %s96
      %p103 = scmp.eq.s32.totalorder %s23, 1
      %p104 = por %p102, %p103
      %p105 = scmp.ne.s32.totalorder %s96, %s97
      %p106 = scmp.eq.s32.totalorder %s23, 0
      %p107 = por %p105, %p106
      %p108 = scmp.ne.s32.totalorder %s96, %s97
      %p109 = scmp.eq.s32.totalorder %s24, 1
      %p110 = por %p108, %p109
      %p112 = scmp.ne.s32.totalorder %s97, %s111
      %p113 = scmp.eq.s32.totalorder %s24, 0
      %p114 = por %p112, %p113
      %s116 = sadd.s32 %s115, 1
      %p119 = scmp.eq.s32.totalorder %s18, 1
      %p120 = scmp.ne.s32.totalorder %s115, %s117
      %p121 = scmp.eq.s32.totalorder %s18, 0
      %p122 = por %p120, %p121
      %p123 = scmp.ne.s32.totalorder %s115, %s117
      %p124 = scmp.eq.s32.totalorder %s23, 1
      %p125 = por %p123, %p124
      %p126 = scmp.ne.s32.totalorder %s117, %s118
      %p127 = scmp.eq.s32.totalorder %s23, 0
      %p128 = por %p126, %p127
      %p129 = scmp.ne.s32.totalorder %s117, %s118
      %p130 = scmp.eq.s32.totalorder %s24, 1
      %p131 = por %p129, %p130
      %p133 = scmp.ne.s32.totalorder %s118, %s132
      %p134 = scmp.eq.s32.totalorder %s24, 0
      %p135 = por %p133, %p134
      %s137 = sadd.s32 %s136, 1
      %p140 = scmp.eq.s32.totalorder %s18, 1
      %p141 = scmp.ne.s32.totalorder %s136, %s138
      %p142 = scmp.eq.s32.totalorder %s18, 0
      %p143 = por %p141, %p142
      %p144 = scmp.ne.s32.totalorder %s136, %s138
      %p145 = scmp.eq.s32.totalorder %s23, 1
      %p146 = por %p144, %p145
      %p147 = scmp.ne.s32.totalorder %s138, %s139
      %p148 = scmp.eq.s32.totalorder %s23, 0
      %p149 = por %p147, %p148
      %p150 = scmp.ne.s32.totalorder %s138, %s139
      %p151 = scmp.eq.s32.totalorder %s24, 1
      %p152 = por %p150, %p151
      %p154 = scmp.ne.s32.totalorder %s139, %s153
      %p155 = scmp.eq.s32.totalorder %s24, 0
      %p156 = por %p154, %p155
      %s158 = sadd.s32 %s157, 1
      %p161 = scmp.eq.s32.totalorder %s18, 1
      %p162 = scmp.ne.s32.totalorder %s157, %s159
      %p163 = scmp.eq.s32.totalorder %s18, 0
      %p164 = por %p162, %p163
      %p165 = scmp.ne.s32.totalorder %s157, %s159
      %p166 = scmp.eq.s32.totalorder %s23, 1
      %p167 = por %p165, %p166
      %p168 = scmp.ne.s32.totalorder %s159, %s160
      %p169 = scmp.eq.s32.totalorder %s23, 0
      %p170 = por %p168, %p169
      %p171 = scmp.ne.s32.totalorder %s159, %s160
      %p172 = scmp.eq.s32.totalorder %s24, 1
      %p173 = por %p171, %p172
      %p175 = scmp.ne.s32.totalorder %s160, %s174
      %p176 = scmp.eq.s32.totalorder %s24, 0
      %p177 = por %p175, %p176
      %s179 = sadd.s32 %s178, 1
      %p182 = scmp.eq.s32.totalorder %s18, 1
      %p183 = scmp.ne.s32.totalorder %s178, %s180
      %p184 = scmp.eq.s32.totalorder %s18, 0
      %p185 = por %p183, %p184
      %p186 = scmp.ne.s32.totalorder %s178, %s180
      %p187 = scmp.eq.s32.totalorder %s23, 1
      %p188 = por %p186, %p187
      %p189 = scmp.ne.s32.totalorder %s180, %s181
      %p190 = scmp.eq.s32.totalorder %s23, 0
      %p191 = por %p189, %p190
      %p192 = scmp.ne.s32.totalorder %s180, %s181
      %p193 = scmp.eq.s32.totalorder %s24, 1
      %p194 = por %p192, %p193
      %p196 = scmp.ne.s32.totalorder %s181, %s195
      %p197 = scmp.eq.s32.totalorder %s24, 0
      %p198 = por %p196, %p197
      %s200 = sadd.s32 %s199, 1
      %p203 = scmp.eq.s32.totalorder %s18, 1
      %p204 = scmp.ne.s32.totalorder %s199, %s201
      %p205 = scmp.eq.s32.totalorder %s18, 0
      %p206 = por %p204, %p205
      %p207 = scmp.ne.s32.totalorder %s199, %s201
      %p208 = scmp.eq.s32.totalorder %s23, 1
      %p209 = por %p207, %p208
      %p210 = scmp.ne.s32.totalorder %s201, %s202
      %p211 = scmp.eq.s32.totalorder %s23, 0
      %p212 = por %p210, %p211
      %p213 = scmp.ne.s32.totalorder %s201, %s202
      %p214 = scmp.eq.s32.totalorder %s24, 1
      %p215 = por %p213, %p214
      %p217 = scmp.ne.s32.totalorder %s202, %s216
      %p218 = scmp.eq.s32.totalorder %s24, 0
      %p219 = por %p217, %p218
      %s220 = ssub.s32 %s18, %s25
      %p221 = scmp.eq.s32.totalorder %s220, 0
      %s223 = sadd.s32 %s222, 1
      %s224 = scalar_select %p221, %s222, %s223
      %p227 = pneg %p221
      %p228 = scmp.eq.s32.totalorder %s18, 1
      %p229 = por %p227, %p228
      %p230 = scmp.ne.s32.totalorder %s222, %s225
      %p231 = scmp.eq.s32.totalorder %s18, 0
      %p232 = por %p230, %p231
      %p233 = scmp.ne.s32.totalorder %s222, %s225
      %p234 = scmp.eq.s32.totalorder %s23, 1
      %p235 = por %p233, %p234
      %p236 = scmp.ne.s32.totalorder %s225, %s226
      %p237 = scmp.eq.s32.totalorder %s23, 0
      %p238 = por %p236, %p237
      %p239 = scmp.ne.s32.totalorder %s225, %s226
      %p240 = scmp.eq.s32.totalorder %s24, 1
      %p241 = por %p239, %p240
      %p243 = scmp.ne.s32.totalorder %s226, %s242
      %p244 = scmp.eq.s32.totalorder %s24, 0
      %p245 = por %p243, %p244
      %p246 = scmp.le.s32.totalorder 1, %s18
      %p247 = scmp.lt.s32.totalorder %s18, 3
      %p248 = pnand %p246, %p247
      %p249 = pneg %p248
      // Predicated region
      $region9: #{tpu_custom_call.1} parent=5 // pred_check
        _
      $region10: #{tpu_custom_call.1} parent=5 // pred_check_branch
        %251 = sbr.rel (%p248) target = $region12
      $region11: #{tpu_custom_call.1} parent=5 // pred_region
        %s252 = ssub.s32 %s18, 1
        // Predicated region
        $region13: #{tpu_custom_call.1} parent=11 // pred_check
          %p253 = pneg %p65
        $region14: #{tpu_custom_call.1} parent=11 // pred_check_branch
          %255 = sbr.rel (%p253) target = $region16
        $region15: #{tpu_custom_call.1} parent=11 // pred_region
          _
        $region16: #{tpu_custom_call.1} parent=11 // pred_fallthru
          _
        // Predicated region
        $region17: #{tpu_custom_call.1} parent=11 // pred_check
          %p256 = pneg %p86
        $region18: #{tpu_custom_call.1} parent=11 // pred_check_branch
          %258 = sbr.rel (%p256) target = $region20
        $region19: #{tpu_custom_call.1} parent=11 // pred_region
          _
        $region20: #{tpu_custom_call.1} parent=11 // pred_fallthru
          _
        // Predicated region
        $region21: #{tpu_custom_call.1} parent=11 // pred_check
          %p259 = pneg %p107
        $region22: #{tpu_custom_call.1} parent=11 // pred_check_branch
          %261 = sbr.rel (%p259) target = $region24
        $region23: #{tpu_custom_call.1} parent=11 // pred_region
          _
        $region24: #{tpu_custom_call.1} parent=11 // pred_fallthru
          _
        // Predicated region
        $region25: #{tpu_custom_call.1} parent=11 // pred_check
          %p262 = pneg %p128
        $region26: #{tpu_custom_call.1} parent=11 // pred_check_branch
          %264 = sbr.rel (%p262) target = $region28
        $region27: #{tpu_custom_call.1} parent=11 // pred_region
          _
        $region28: #{tpu_custom_call.1} parent=11 // pred_fallthru
          _
        // Predicated region
        $region29: #{tpu_custom_call.1} parent=11 // pred_check
          %p265 = pneg %p149
        $region30: #{tpu_custom_call.1} parent=11 // pred_check_branch
          %267 = sbr.rel (%p265) target = $region32
        $region31: #{tpu_custom_call.1} parent=11 // pred_region
          _
        $region32: #{tpu_custom_call.1} parent=11 // pred_fallthru
          _
        // Predicated region
        $region33: #{tpu_custom_call.1} parent=11 // pred_check
          %p268 = pneg %p170
        $region34: #{tpu_custom_call.1} parent=11 // pred_check_branch
          %270 = sbr.rel (%p268) target = $region36
        $region35: #{tpu_custom_call.1} parent=11 // pred_region
          _
        $region36: #{tpu_custom_call.1} parent=11 // pred_fallthru
          _
        // Predicated region
        $region37: #{tpu_custom_call.1} parent=11 // pred_check
          %p271 = pneg %p191
        $region38: #{tpu_custom_call.1} parent=11 // pred_check_branch
          %273 = sbr.rel (%p271) target = $region40
        $region39: #{tpu_custom_call.1} parent=11 // pred_region
          _
        $region40: #{tpu_custom_call.1} parent=11 // pred_fallthru
          _
        // Predicated region
        $region41: #{tpu_custom_call.1} parent=11 // pred_check
          %p274 = pneg %p212
        $region42: #{tpu_custom_call.1} parent=11 // pred_check_branch
          %276 = sbr.rel (%p274) target = $region44
        $region43: #{tpu_custom_call.1} parent=11 // pred_region
          _
        $region44: #{tpu_custom_call.1} parent=11 // pred_fallthru
          _
      $region12: #{tpu_custom_call.1} parent=5 // pred_fallthru
        _
      %p277 = scmp.lt.s32.totalorder %s18, 2
      // Predicated region
      $region45: #{tpu_custom_call.1} parent=5 // pred_check
        %p278 = pneg %p277
      $region46: #{tpu_custom_call.1} parent=5 // pred_check_branch
        %280 = sbr.rel (%p278) target = $region48
      $region47: #{tpu_custom_call.1} parent=5 // pred_region
        // Predicated region
        $region49: #{tpu_custom_call.1} parent=47 // pred_check
          %p281 = pneg %p38
        $region50: #{tpu_custom_call.1} parent=47 // pred_check_branch
          %283 = sbr.rel (%p281) target = $region52
        $region51: #{tpu_custom_call.1} parent=47 // pred_region
          %p284 = scmp.lt.s32.totalorder %s18, 1
          %s285 = scalar_select %p284, %s18, 1
          %s286 = smul.addr %s285, 32
          %s287 = smul.addr %s286, 8
          %s288 = scalar_lea.vmem %s0, %s287
        $region52: #{tpu_custom_call.1} parent=47 // pred_fallthru
          _
      $region48: #{tpu_custom_call.1} parent=5 // pred_fallthru
        _
      %p289 = scmp.le.s32.totalorder 1, %s18
      %p290 = scmp.lt.s32.totalorder %s18, 3
      %p291 = pnand %p289, %p290
      %p292 = pneg %p291
      // Predicated region
      $region53: #{tpu_custom_call.1} parent=5 // pred_check
        _
      $region54: #{tpu_custom_call.1} parent=5 // pred_check_branch
        %294 = sbr.rel (%p291) target = $region56
      $region55: #{tpu_custom_call.1} parent=5 // pred_region
        %s295 = ssub.s32 %s18, 1
        %p296 = scmp.lt.s32.totalorder %s23, 1
        %s297 = scalar_select %p296, %s23, 1
        %s298 = smul.addr %s297, 32
        %s299 = smul.addr %s298, 8
        %s300 = scalar_lea.vmem %s0, %s299
        %p301 = pneg %p44
        %p302 = pneg %p41
        %p303 = pneg %p65
        %p304 = pneg %p62
        %p305 = pneg %p86
        %p306 = pneg %p83
        %p307 = pneg %p107
        %p308 = pneg %p104
        %p309 = pneg %p128
        %p310 = pneg %p125
        %p311 = pneg %p149
        %p312 = pneg %p146
        %p313 = pneg %p170
        %p314 = pneg %p167
        %p315 = pneg %p191
        %p316 = pneg %p188
        %p317 = pneg %p212
        %p318 = pneg %p209
        %p319 = pneg %p238
        %p320 = pneg %p235
        %s321 = sand.u32 %s225, 1
        %s322 = scalar_lea.sflag [#allocation6], %s321
        %s323 = sand.u32 %s225, 1
        %s324 = smul.addr %s323, 16
        %s325 = scalar_lea.vmem [#allocation5], %s324
        %p326 = scmp.lt.s32.totalorder %s23, 1
        %s327 = scalar_select %p326, %s23, 1
        %s328 = smul.addr %s327, 32
        %s329 = smul.addr %s328, 8
        %s330 = scalar_lea.vmem %s0, %s329
        %v332 = vld [vmem:[%s3] sm:$0xf]
        %v333 = vld [vmem:[%s4] sm:$0x1]
        %v334 = vld [vmem:[%s1] sm:$0x7]
        %v335 = vld [vmem:[%s1 + $0x4] sm:$0x7]
        %v336 = vld [vmem:[%s1 + $0x8] sm:$0x7]
        %v337 = vld [vmem:[%s2] sm:$0x1]
        %vm338 = vcmask 64512
        %339 = vst.msk [vmem:[#allocation2] sm:$0xff] %vm338, 0.0
        %340 = vst.msk [vmem:[#allocation2 + $0x8] sm:$0xff] %vm338, 0.0
        %341 = vst.msk [vmem:[#allocation2 + $0x10] sm:$0xff] %vm338, 0.0
        %vm342 = vcmask 57344
        %343 = vst.msk [vmem:[#allocation2 + $0x18] sm:$0x1] %vm342, 0.0
        %s344 = scalar_lea.vmem [#allocation2], 544
        %345 = vst.msk [vmem:[%s344] sm:$0xff] %vm338, 0.0
        %346 = vst.msk [vmem:[%s344 + $0x8] sm:$0xff] %vm338, 0.0
        %347 = vst.msk [vmem:[%s344 + $0x10] sm:$0xff] %vm338, 0.0
        %348 = vst.msk [vmem:[%s344 + $0x18] sm:$0x1] %vm342, 0.0
        %s349 = scalar_lea.vmem [#allocation2], 32
        %350 = vst.msk [vmem:[%s349 + $0x7] sm:$0x1] %vm342, 0.0
        %351 = vst.msk [vmem:[%s349 + $0x27] sm:$0x1] %vm342, 0.0
        %352 = vst.msk [vmem:[%s349 + $0x47] sm:$0x1] %vm342, 0.0
        %353 = vst.msk [vmem:[%s349 + $0x67] sm:$0x1] %vm342, 0.0
        %354 = vst.msk [vmem:[%s349 + $0x87] sm:$0x1] %vm342, 0.0
        %355 = vst.msk [vmem:[%s349 + $0xa7] sm:$0x1] %vm342, 0.0
        %356 = vst.msk [vmem:[%s349 + $0xc7] sm:$0x1] %vm342, 0.0
        %357 = vst.msk [vmem:[%s349 + $0xe7] sm:$0x1] %vm342, 0.0
        %358 = vst.msk [vmem:[%s349 + $0x107] sm:$0x1] %vm342, 0.0
        %359 = vst.msk [vmem:[%s349 + $0x127] sm:$0x1] %vm342, 0.0
        %360 = vst.msk [vmem:[%s349 + $0x147] sm:$0x1] %vm342, 0.0
        %361 = vst.msk [vmem:[%s349 + $0x167] sm:$0x1] %vm342, 0.0
        %362 = vst.msk [vmem:[%s349 + $0x187] sm:$0x1] %vm342, 0.0
        %363 = vst.msk [vmem:[%s349 + $0x1a7] sm:$0x1] %vm342, 0.0
        %364 = vst.msk [vmem:[%s349 + $0x1c7] sm:$0x1] %vm342, 0.0
        %365 = vst.msk [vmem:[%s349 + $0x1e7] sm:$0x1] %vm342, 0.0
        %366 = vst.msk [vmem:[%s349 + $0x18] sm:$0x1] %vm342, 0.0
        %367 = vst.msk [vmem:[%s349 + $0x38] sm:$0x1] %vm342, 0.0
        %368 = vst.msk [vmem:[%s349 + $0x58] sm:$0x1] %vm342, 0.0
        %369 = vst.msk [vmem:[%s349 + $0x78] sm:$0x1] %vm342, 0.0
        %370 = vst.msk [vmem:[%s349 + $0x98] sm:$0x1] %vm342, 0.0
        %371 = vst.msk [vmem:[%s349 + $0xb8] sm:$0x1] %vm342, 0.0
        %372 = vst.msk [vmem:[%s349 + $0xd8] sm:$0x1] %vm342, 0.0
        %373 = vst.msk [vmem:[%s349 + $0xf8] sm:$0x1] %vm342, 0.0
        %374 = vst.msk [vmem:[%s349 + $0x118] sm:$0x1] %vm342, 0.0
        %375 = vst.msk [vmem:[%s349 + $0x138] sm:$0x1] %vm342, 0.0
        %376 = vst.msk [vmem:[%s349 + $0x158] sm:$0x1] %vm342, 0.0
        %377 = vst.msk [vmem:[%s349 + $0x178] sm:$0x1] %vm342, 0.0
        %378 = vst.msk [vmem:[%s349 + $0x198] sm:$0x1] %vm342, 0.0
        %379 = vst.msk [vmem:[%s349 + $0x1b8] sm:$0x1] %vm342, 0.0
        %380 = vst.msk [vmem:[%s349 + $0x1d8] sm:$0x1] %vm342, 0.0
        %381 = vst.msk [vmem:[%s349 + $0x1f8] sm:$0x1] %vm342, 0.0
        %v382 = vld [vmem:[%s330] sm:$0xff]
        %v383 = vld [vmem:[%s330 + $0x8] sm:$0xff]
        %v384 = vld [vmem:[%s330 + $0x10] sm:$0xff]
        %v385 = vld [vmem:[%s330 + $0x18] sm:$0xff]
        %v386 = vld [vmem:[%s330 + $0x20] sm:$0xff]
        %v387 = vld [vmem:[%s330 + $0x28] sm:$0xff]
        %v388 = vld [vmem:[%s330 + $0x30] sm:$0xff]
        %v389 = vld [vmem:[%s330 + $0x38] sm:$0xff]
        %v390 = vld [vmem:[%s330 + $0x40] sm:$0xff]
        %v391 = vld [vmem:[%s330 + $0x48] sm:$0xff]
        %v392 = vld [vmem:[%s330 + $0x50] sm:$0xff]
        %v393 = vld [vmem:[%s330 + $0x58] sm:$0xff]
        %v394 = vld [vmem:[%s330 + $0x60] sm:$0xff]
        %v395 = vld [vmem:[%s330 + $0x68] sm:$0xff]
        %v396 = vld [vmem:[%s330 + $0x70] sm:$0xff]
        %v397 = vld [vmem:[%s330 + $0x78] sm:$0xff]
        %398 = vst.msk [vmem:[%s349 + $0x8] sm:$0xff] %vm338, %v382
        %399 = vst.msk [vmem:[%s349 + $0x10] sm:$0xff] %vm338, %v383
        %400 = vst.msk [vmem:[%s349 + $0x28] sm:$0xff] %vm338, %v384
        %401 = vst.msk [vmem:[%s349 + $0x30] sm:$0xff] %vm338, %v385
        %402 = vst.msk [vmem:[%s349 + $0x48] sm:$0xff] %vm338, %v386
        %403 = vst.msk [vmem:[%s349 + $0x50] sm:$0xff] %vm338, %v387
        %404 = vst.msk [vmem:[%s349 + $0x68] sm:$0xff] %vm338, %v388
        %405 = vst.msk [vmem:[%s349 + $0x70] sm:$0xff] %vm338, %v389
        %406 = vst.msk [vmem:[%s349 + $0x88] sm:$0xff] %vm338, %v390
        %407 = vst.msk [vmem:[%s349 + $0x90] sm:$0xff] %vm338, %v391
        %408 = vst.msk [vmem:[%s349 + $0xa8] sm:$0xff] %vm338, %v392
        %409 = vst.msk [vmem:[%s349 + $0xb0] sm:$0xff] %vm338, %v393
        %410 = vst.msk [vmem:[%s349 + $0xc8] sm:$0xff] %vm338, %v394
        %411 = vst.msk [vmem:[%s349 + $0xd0] sm:$0xff] %vm338, %v395
        %412 = vst.msk [vmem:[%s349 + $0xe8] sm:$0xff] %vm338, %v396
        %413 = vst.msk [vmem:[%s349 + $0xf0] sm:$0xff] %vm338, %v397
        %s414 = scalar_lea.vmem %s330, 128
        %v415 = vld [vmem:[%s414] sm:$0xff]
        %v416 = vld [vmem:[%s414 + $0x8] sm:$0xff]
        %v417 = vld [vmem:[%s414 + $0x10] sm:$0xff]
        %v418 = vld [vmem:[%s414 + $0x18] sm:$0xff]
        %v419 = vld [vmem:[%s414 + $0x20] sm:$0xff]
        %v420 = vld [vmem:[%s414 + $0x28] sm:$0xff]
        %v421 = vld [vmem:[%s414 + $0x30] sm:$0xff]
        %v422 = vld [vmem:[%s414 + $0x38] sm:$0xff]
        %v423 = vld [vmem:[%s414 + $0x40] sm:$0xff]
        %v424 = vld [vmem:[%s414 + $0x48] sm:$0xff]
        %v425 = vld [vmem:[%s414 + $0x50] sm:$0xff]
        %v426 = vld [vmem:[%s414 + $0x58] sm:$0xff]
        %v427 = vld [vmem:[%s414 + $0x60] sm:$0xff]
        %v428 = vld [vmem:[%s414 + $0x68] sm:$0xff]
        %v429 = vld [vmem:[%s414 + $0x70] sm:$0xff]
        %v430 = vld [vmem:[%s414 + $0x78] sm:$0xff]
        %s431 = scalar_lea.vmem [#allocation2], 288
        %432 = vst.msk [vmem:[%s431 + $0x8] sm:$0xff] %vm338, %v415
        %433 = vst.msk [vmem:[%s431 + $0x10] sm:$0xff] %vm338, %v416
        %434 = vst.msk [vmem:[%s431 + $0x28] sm:$0xff] %vm338, %v417
        %435 = vst.msk [vmem:[%s431 + $0x30] sm:$0xff] %vm338, %v418
        %436 = vst.msk [vmem:[%s431 + $0x48] sm:$0xff] %vm338, %v419
        %437 = vst.msk [vmem:[%s431 + $0x50] sm:$0xff] %vm338, %v420
        %438 = vst.msk [vmem:[%s431 + $0x68] sm:$0xff] %vm338, %v421
        %439 = vst.msk [vmem:[%s431 + $0x70] sm:$0xff] %vm338, %v422
        %440 = vst.msk [vmem:[%s431 + $0x88] sm:$0xff] %vm338, %v423
        %441 = vst.msk [vmem:[%s431 + $0x90] sm:$0xff] %vm338, %v424
        %442 = vst.msk [vmem:[%s431 + $0xa8] sm:$0xff] %vm338, %v425
        %443 = vst.msk [vmem:[%s431 + $0xb0] sm:$0xff] %vm338, %v426
        %444 = vst.msk [vmem:[%s431 + $0xc8] sm:$0xff] %vm338, %v427
        %445 = vst.msk [vmem:[%s431 + $0xd0] sm:$0xff] %vm338, %v428
        %446 = vst.msk [vmem:[%s431 + $0xe8] sm:$0xff] %vm338, %v429
        %447 = vst.msk [vmem:[%s431 + $0xf0] sm:$0xff] %vm338, %v430
        %v448 = vld [vmem:[%s5] sm:$0x7]
        %v449 = vld [vmem:[%s5 + $0x4] sm:$0x7]
        %v450 = vld [vmem:[%s5 + $0x8] sm:$0x7]
        %v451 = vld [vmem:[%s6] sm:$0x1]
        %vm452 = vcmask 261120
        %453 = vst.msk [vmem:[#allocation3] sm:$0xff] %vm452, 0.0
        %454 = vst.msk [vmem:[#allocation3 + $0x8] sm:$0xff] %vm452, 0.0
        %455 = vst.msk [vmem:[#allocation3 + $0x10] sm:$0xff] %vm452, 0.0
        %vm456 = vcmask 253952
        %457 = vst.msk [vmem:[#allocation3 + $0x18] sm:$0x1] %vm456, 0.0
        %s458 = scalar_lea.vmem [#allocation3], 544
        %459 = vst.msk [vmem:[%s458] sm:$0xff] %vm452, 0.0
        %460 = vst.msk [vmem:[%s458 + $0x8] sm:$0xff] %vm452, 0.0
        %461 = vst.msk [vmem:[%s458 + $0x10] sm:$0xff] %vm452, 0.0
        %462 = vst.msk [vmem:[%s458 + $0x18] sm:$0x1] %vm456, 0.0
        %s463 = scalar_lea.vmem [#allocation3], 32
        %464 = vst.msk [vmem:[%s463 + $0x7] sm:$0x1] %vm456, 0.0
        %465 = vst.msk [vmem:[%s463 + $0x27] sm:$0x1] %vm456, 0.0
        %466 = vst.msk [vmem:[%s463 + $0x47] sm:$0x1] %vm456, 0.0
        %467 = vst.msk [vmem:[%s463 + $0x67] sm:$0x1] %vm456, 0.0
        %468 = vst.msk [vmem:[%s463 + $0x87] sm:$0x1] %vm456, 0.0
        %469 = vst.msk [vmem:[%s463 + $0xa7] sm:$0x1] %vm456, 0.0
        %470 = vst.msk [vmem:[%s463 + $0xc7] sm:$0x1] %vm456, 0.0
        %471 = vst.msk [vmem:[%s463 + $0xe7] sm:$0x1] %vm456, 0.0
        %472 = vst.msk [vmem:[%s463 + $0x107] sm:$0x1] %vm456, 0.0
        %473 = vst.msk [vmem:[%s463 + $0x127] sm:$0x1] %vm456, 0.0
        %474 = vst.msk [vmem:[%s463 + $0x147] sm:$0x1] %vm456, 0.0
        %475 = vst.msk [vmem:[%s463 + $0x167] sm:$0x1] %vm456, 0.0
        %476 = vst.msk [vmem:[%s463 + $0x187] sm:$0x1] %vm456, 0.0
        %477 = vst.msk [vmem:[%s463 + $0x1a7] sm:$0x1] %vm456, 0.0
        %478 = vst.msk [vmem:[%s463 + $0x1c7] sm:$0x1] %vm456, 0.0
        %479 = vst.msk [vmem:[%s463 + $0x1e7] sm:$0x1] %vm456, 0.0
        %480 = vst.msk [vmem:[%s463 + $0x18] sm:$0x1] %vm456, 0.0
        %481 = vst.msk [vmem:[%s463 + $0x38] sm:$0x1] %vm456, 0.0
        %482 = vst.msk [vmem:[%s463 + $0x58] sm:$0x1] %vm456, 0.0
        %483 = vst.msk [vmem:[%s463 + $0x78] sm:$0x1] %vm456, 0.0
        %484 = vst.msk [vmem:[%s463 + $0x98] sm:$0x1] %vm456, 0.0
        %485 = vst.msk [vmem:[%s463 + $0xb8] sm:$0x1] %vm456, 0.0
        %486 = vst.msk [vmem:[%s463 + $0xd8] sm:$0x1] %vm456, 0.0
        %487 = vst.msk [vmem:[%s463 + $0xf8] sm:$0x1] %vm456, 0.0
        %488 = vst.msk [vmem:[%s463 + $0x118] sm:$0x1] %vm456, 0.0
        %489 = vst.msk [vmem:[%s463 + $0x138] sm:$0x1] %vm456, 0.0
        %490 = vst.msk [vmem:[%s463 + $0x158] sm:$0x1] %vm456, 0.0
        %491 = vst.msk [vmem:[%s463 + $0x178] sm:$0x1] %vm456, 0.0
        %492 = vst.msk [vmem:[%s463 + $0x198] sm:$0x1] %vm456, 0.0
        %493 = vst.msk [vmem:[%s463 + $0x1b8] sm:$0x1] %vm456, 0.0
        %494 = vst.msk [vmem:[%s463 + $0x1d8] sm:$0x1] %vm456, 0.0
        %495 = vst.msk [vmem:[%s463 + $0x1f8] sm:$0x1] %vm456, 0.0
        %v496 = vld [vmem:[#allocation2 + $0x7] sm:$0xff]
        %v497 = vld [vmem:[#allocation2 + $0xf] sm:$0xff]
        %v498 = vld [vmem:[#allocation2 + $0x27] sm:$0xff]
        %v499 = vld [vmem:[#allocation2 + $0x2f] sm:$0xff]
        %v500 = vld [vmem:[#allocation2 + $0x47] sm:$0xff]
        %v501 = vld [vmem:[#allocation2 + $0x4f] sm:$0xff]
        %v502 = vld [vmem:[#allocation2 + $0x67] sm:$0xff]
        %v503 = vld [vmem:[#allocation2 + $0x6f] sm:$0xff]
        %v504 = vld [vmem:[#allocation2 + $0x87] sm:$0xff]
        %v505 = vld [vmem:[#allocation2 + $0x8f] sm:$0xff]
        %v506 = vld [vmem:[#allocation2 + $0xa7] sm:$0xff]
        %v507 = vld [vmem:[#allocation2 + $0xaf] sm:$0xff]
        %v508 = vld [vmem:[#allocation2 + $0xc7] sm:$0xff]
        %v509 = vld [vmem:[#allocation2 + $0xcf] sm:$0xff]
        %v510 = vld [vmem:[#allocation2 + $0xe7] sm:$0xff]
        %v511 = vld [vmem:[#allocation2 + $0xef] sm:$0xff]
        %v512 = vperm.slane %v334, 0
        %v513 = vmul.f32 %v496, %v512
        %v514 = vmul.f32 %v497, %v512
        %v515 = vmul.f32 %v498, %v512
        %v516 = vmul.f32 %v499, %v512
        %v517 = vmul.f32 %v500, %v512
        %v518 = vmul.f32 %v501, %v512
        %v519 = vmul.f32 %v502, %v512
        %v520 = vmul.f32 %v503, %v512
        %v521 = vmul.f32 %v504, %v512
        %v522 = vmul.f32 %v505, %v512
        %v523 = vmul.f32 %v506, %v512
        %v524 = vmul.f32 %v507, %v512
        %v525 = vmul.f32 %v508, %v512
        %v526 = vmul.f32 %v509, %v512
        %v527 = vmul.f32 %v510, %v512
        %v528 = vmul.f32 %v511, %v512
        %v529 = vld [vmem:[#allocation2 + $0x8] sm:$0xff]
        %v530 = vld [vmem:[#allocation2 + $0x10] sm:$0xff]
        %v531 = vld [vmem:[#allocation2 + $0x28] sm:$0xff]
        %v532 = vld [vmem:[#allocation2 + $0x30] sm:$0xff]
        %v533 = vld [vmem:[#allocation2 + $0x48] sm:$0xff]
        %v534 = vld [vmem:[#allocation2 + $0x50] sm:$0xff]
        %v535 = vld [vmem:[#allocation2 + $0x68] sm:$0xff]
        %v536 = vld [vmem:[#allocation2 + $0x70] sm:$0xff]
        %v537 = vld [vmem:[#allocation2 + $0x88] sm:$0xff]
        %v538 = vld [vmem:[#allocation2 + $0x90] sm:$0xff]
        %v539 = vld [vmem:[#allocation2 + $0xa8] sm:$0xff]
        %v540 = vld [vmem:[#allocation2 + $0xb0] sm:$0xff]
        %v541 = vld [vmem:[#allocation2 + $0xc8] sm:$0xff]
        %v542 = vld [vmem:[#allocation2 + $0xd0] sm:$0xff]
        %v543 = vld [vmem:[#allocation2 + $0xe8] sm:$0xff]
        %v544 = vld [vmem:[#allocation2 + $0xf0] sm:$0xff]
        %v545 = vperm.slane %v334, 1
        %v546 = vmul.f32 %v529, %v545
        %v547 = vmul.f32 %v530, %v545
        %v548 = vmul.f32 %v531, %v545
        %v549 = vmul.f32 %v532, %v545
        %v550 = vmul.f32 %v533, %v545
        %v551 = vmul.f32 %v534, %v545
        %v552 = vmul.f32 %v535, %v545
        %v553 = vmul.f32 %v536, %v545
        %v554 = vmul.f32 %v537, %v545
        %v555 = vmul.f32 %v538, %v545
        %v556 = vmul.f32 %v539, %v545
        %v557 = vmul.f32 %v540, %v545
        %v558 = vmul.f32 %v541, %v545
        %v559 = vmul.f32 %v542, %v545
        %v560 = vmul.f32 %v543, %v545
        %v561 = vmul.f32 %v544, %v545
        %v562 = vadd.f32 %v513, %v546
        %v563 = vadd.f32 %v514, %v547
        %v564 = vadd.f32 %v515, %v548
        %v565 = vadd.f32 %v516, %v549
        %v566 = vadd.f32 %v517, %v550
        %v567 = vadd.f32 %v518, %v551
        %v568 = vadd.f32 %v519, %v552
        %v569 = vadd.f32 %v520, %v553
        %v570 = vadd.f32 %v521, %v554
        %v571 = vadd.f32 %v522, %v555
        %v572 = vadd.f32 %v523, %v556
        %v573 = vadd.f32 %v524, %v557
        %v574 = vadd.f32 %v525, %v558
        %v575 = vadd.f32 %v526, %v559
        %v576 = vadd.f32 %v527, %v560
        %v577 = vadd.f32 %v528, %v561
        %v578 = vld [vmem:[#allocation2 + $0x9] sm:$0xff]
        %v579 = vld [vmem:[#allocation2 + $0x11] sm:$0xff]
        %v580 = vld [vmem:[#allocation2 + $0x29] sm:$0xff]
        %v581 = vld [vmem:[#allocation2 + $0x31] sm:$0xff]
        %v582 = vld [vmem:[#allocation2 + $0x49] sm:$0xff]
        %v583 = vld [vmem:[#allocation2 + $0x51] sm:$0xff]
        %v584 = vld [vmem:[#allocation2 + $0x69] sm:$0xff]
        %v585 = vld [vmem:[#allocation2 + $0x71] sm:$0xff]
        %v586 = vld [vmem:[#allocation2 + $0x89] sm:$0xff]
        %v587 = vld [vmem:[#allocation2 + $0x91] sm:$0xff]
        %v588 = vld [vmem:[#allocation2 + $0xa9] sm:$0xff]
        %v589 = vld [vmem:[#allocation2 + $0xb1] sm:$0xff]
        %v590 = vld [vmem:[#allocation2 + $0xc9] sm:$0xff]
        %v591 = vld [vmem:[#allocation2 + $0xd1] sm:$0xff]
        %v592 = vld [vmem:[#allocation2 + $0xe9] sm:$0xff]
        %v593 = vld [vmem:[#allocation2 + $0xf1] sm:$0xff]
        %v594 = vperm.slane %v334, 2
        %v595 = vmul.f32 %v578, %v594
        %v596 = vmul.f32 %v579, %v594
        %v597 = vmul.f32 %v580, %v594
        %v598 = vmul.f32 %v581, %v594
        %v599 = vmul.f32 %v582, %v594
        %v600 = vmul.f32 %v583, %v594
        %v601 = vmul.f32 %v584, %v594
        %v602 = vmul.f32 %v585, %v594
        %v603 = vmul.f32 %v586, %v594
        %v604 = vmul.f32 %v587, %v594
        %v605 = vmul.f32 %v588, %v594
        %v606 = vmul.f32 %v589, %v594
        %v607 = vmul.f32 %v590, %v594
        %v608 = vmul.f32 %v591, %v594
        %v609 = vmul.f32 %v592, %v594
        %v610 = vmul.f32 %v593, %v594
        %v611 = vadd.f32 %v562, %v595
        %v612 = vadd.f32 %v563, %v596
        %v613 = vadd.f32 %v564, %v597
        %v614 = vadd.f32 %v565, %v598
        %v615 = vadd.f32 %v566, %v599
        %v616 = vadd.f32 %v567, %v600
        %v617 = vadd.f32 %v568, %v601
        %v618 = vadd.f32 %v569, %v602
        %v619 = vadd.f32 %v570, %v603
        %v620 = vadd.f32 %v571, %v604
        %v621 = vadd.f32 %v572, %v605
        %v622 = vadd.f32 %v573, %v606
        %v623 = vadd.f32 %v574, %v607
        %v624 = vadd.f32 %v575, %v608
        %v625 = vadd.f32 %v576, %v609
        %v626 = vadd.f32 %v577, %v610
        %v627 = vld [vmem:[%s349 + $0x7] sm:$0xff]
        %v628 = vld [vmem:[%s349 + $0xf] sm:$0xff]
        %v629 = vld [vmem:[%s349 + $0x27] sm:$0xff]
        %v630 = vld [vmem:[%s349 + $0x2f] sm:$0xff]
        %v631 = vld [vmem:[%s349 + $0x47] sm:$0xff]
        %v632 = vld [vmem:[%s349 + $0x4f] sm:$0xff]
        %v633 = vld [vmem:[%s349 + $0x67] sm:$0xff]
        %v634 = vld [vmem:[%s349 + $0x6f] sm:$0xff]
        %v635 = vld [vmem:[%s349 + $0x87] sm:$0xff]
        %v636 = vld [vmem:[%s349 + $0x8f] sm:$0xff]
        %v637 = vld [vmem:[%s349 + $0xa7] sm:$0xff]
        %v638 = vld [vmem:[%s349 + $0xaf] sm:$0xff]
        %v639 = vld [vmem:[%s349 + $0xc7] sm:$0xff]
        %v640 = vld [vmem:[%s349 + $0xcf] sm:$0xff]
        %v641 = vld [vmem:[%s349 + $0xe7] sm:$0xff]
        %v642 = vld [vmem:[%s349 + $0xef] sm:$0xff]
        %v643 = vperm.slane %v335, 0
        %v644 = vmul.f32 %v627, %v643
        %v645 = vmul.f32 %v628, %v643
        %v646 = vmul.f32 %v629, %v643
        %v647 = vmul.f32 %v630, %v643
        %v648 = vmul.f32 %v631, %v643
        %v649 = vmul.f32 %v632, %v643
        %v650 = vmul.f32 %v633, %v643
        %v651 = vmul.f32 %v634, %v643
        %v652 = vmul.f32 %v635, %v643
        %v653 = vmul.f32 %v636, %v643
        %v654 = vmul.f32 %v637, %v643
        %v655 = vmul.f32 %v638, %v643
        %v656 = vmul.f32 %v639, %v643
        %v657 = vmul.f32 %v640, %v643
        %v658 = vmul.f32 %v641, %v643
        %v659 = vmul.f32 %v642, %v643
        %v660 = vadd.f32 %v611, %v644
        %v661 = vadd.f32 %v612, %v645
        %v662 = vadd.f32 %v613, %v646
        %v663 = vadd.f32 %v614, %v647
        %v664 = vadd.f32 %v615, %v648
        %v665 = vadd.f32 %v616, %v649
        %v666 = vadd.f32 %v617, %v650
        %v667 = vadd.f32 %v618, %v651
        %v668 = vadd.f32 %v619, %v652
        %v669 = vadd.f32 %v620, %v653
        %v670 = vadd.f32 %v621, %v654
        %v671 = vadd.f32 %v622, %v655
        %v672 = vadd.f32 %v623, %v656
        %v673 = vadd.f32 %v624, %v657
        %v674 = vadd.f32 %v625, %v658
        %v675 = vadd.f32 %v626, %v659
        %v676 = vld [vmem:[%s349 + $0x8] sm:$0xff]
        %v677 = vld [vmem:[%s349 + $0x10] sm:$0xff]
        %v678 = vld [vmem:[%s349 + $0x28] sm:$0xff]
        %v679 = vld [vmem:[%s349 + $0x30] sm:$0xff]
        %v680 = vld [vmem:[%s349 + $0x48] sm:$0xff]
        %v681 = vld [vmem:[%s349 + $0x50] sm:$0xff]
        %v682 = vld [vmem:[%s349 + $0x68] sm:$0xff]
        %v683 = vld [vmem:[%s349 + $0x70] sm:$0xff]
        %v684 = vld [vmem:[%s349 + $0x88] sm:$0xff]
        %v685 = vld [vmem:[%s349 + $0x90] sm:$0xff]
        %v686 = vld [vmem:[%s349 + $0xa8] sm:$0xff]
        %v687 = vld [vmem:[%s349 + $0xb0] sm:$0xff]
        %v688 = vld [vmem:[%s349 + $0xc8] sm:$0xff]
        %v689 = vld [vmem:[%s349 + $0xd0] sm:$0xff]
        %v690 = vld [vmem:[%s349 + $0xe8] sm:$0xff]
        %v691 = vld [vmem:[%s349 + $0xf0] sm:$0xff]
        %v692 = vperm.slane %v335, 1
        %v693 = vmul.f32 %v676, %v692
        %v694 = vmul.f32 %v677, %v692
        %v695 = vmul.f32 %v678, %v692
        %v696 = vmul.f32 %v679, %v692
        %v697 = vmul.f32 %v680, %v692
        %v698 = vmul.f32 %v681, %v692
        %v699 = vmul.f32 %v682, %v692
        %v700 = vmul.f32 %v683, %v692
        %v701 = vmul.f32 %v684, %v692
        %v702 = vmul.f32 %v685, %v692
        %v703 = vmul.f32 %v686, %v692
        %v704 = vmul.f32 %v687, %v692
        %v705 = vmul.f32 %v688, %v692
        %v706 = vmul.f32 %v689, %v692
        %v707 = vmul.f32 %v690, %v692
        %v708 = vmul.f32 %v691, %v692
        %v709 = vadd.f32 %v660, %v693
        %v710 = vadd.f32 %v661, %v694
        %v711 = vadd.f32 %v662, %v695
        %v712 = vadd.f32 %v663, %v696
        %v713 = vadd.f32 %v664, %v697
        %v714 = vadd.f32 %v665, %v698
        %v715 = vadd.f32 %v666, %v699
        %v716 = vadd.f32 %v667, %v700
        %v717 = vadd.f32 %v668, %v701
        %v718 = vadd.f32 %v669, %v702
        %v719 = vadd.f32 %v670, %v703
        %v720 = vadd.f32 %v671, %v704
        %v721 = vadd.f32 %v672, %v705
        %v722 = vadd.f32 %v673, %v706
        %v723 = vadd.f32 %v674, %v707
        %v724 = vadd.f32 %v675, %v708
        %v725 = vld [vmem:[%s349 + $0x9] sm:$0xff]
        %v726 = vld [vmem:[%s349 + $0x11] sm:$0xff]
        %v727 = vld [vmem:[%s349 + $0x29] sm:$0xff]
        %v728 = vld [vmem:[%s349 + $0x31] sm:$0xff]
        %v729 = vld [vmem:[%s349 + $0x49] sm:$0xff]
        %v730 = vld [vmem:[%s349 + $0x51] sm:$0xff]
        %v731 = vld [vmem:[%s349 + $0x69] sm:$0xff]
        %v732 = vld [vmem:[%s349 + $0x71] sm:$0xff]
        %v733 = vld [vmem:[%s349 + $0x89] sm:$0xff]
        %v734 = vld [vmem:[%s349 + $0x91] sm:$0xff]
        %v735 = vld [vmem:[%s349 + $0xa9] sm:$0xff]
        %v736 = vld [vmem:[%s349 + $0xb1] sm:$0xff]
        %v737 = vld [vmem:[%s349 + $0xc9] sm:$0xff]
        %v738 = vld [vmem:[%s349 + $0xd1] sm:$0xff]
        %v739 = vld [vmem:[%s349 + $0xe9] sm:$0xff]
        %v740 = vld [vmem:[%s349 + $0xf1] sm:$0xff]
        %v741 = vperm.slane %v335, 2
        %v742 = vmul.f32 %v725, %v741
        %v743 = vmul.f32 %v726, %v741
        %v744 = vmul.f32 %v727, %v741
        %v745 = vmul.f32 %v728, %v741
        %v746 = vmul.f32 %v729, %v741
        %v747 = vmul.f32 %v730, %v741
        %v748 = vmul.f32 %v731, %v741
        %v749 = vmul.f32 %v732, %v741
        %v750 = vmul.f32 %v733, %v741
        %v751 = vmul.f32 %v734, %v741
        %v752 = vmul.f32 %v735, %v741
        %v753 = vmul.f32 %v736, %v741
        %v754 = vmul.f32 %v737, %v741
        %v755 = vmul.f32 %v738, %v741
        %v756 = vmul.f32 %v739, %v741
        %v757 = vmul.f32 %v740, %v741
        %v758 = vadd.f32 %v709, %v742
        %v759 = vadd.f32 %v710, %v743
        %v760 = vadd.f32 %v711, %v744
        %v761 = vadd.f32 %v712, %v745
        %v762 = vadd.f32 %v713, %v746
        %v763 = vadd.f32 %v714, %v747
        %v764 = vadd.f32 %v715, %v748
        %v765 = vadd.f32 %v716, %v749
        %v766 = vadd.f32 %v717, %v750
        %v767 = vadd.f32 %v718, %v751
        %v768 = vadd.f32 %v719, %v752
        %v769 = vadd.f32 %v720, %v753
        %v770 = vadd.f32 %v721, %v754
        %v771 = vadd.f32 %v722, %v755
        %v772 = vadd.f32 %v723, %v756
        %v773 = vadd.f32 %v724, %v757
        %s774 = scalar_lea.vmem [#allocation2], 64
        %v775 = vld [vmem:[%s774 + $0x7] sm:$0xff]
        %v776 = vld [vmem:[%s774 + $0xf] sm:$0xff]
        %v777 = vld [vmem:[%s774 + $0x27] sm:$0xff]
        %v778 = vld [vmem:[%s774 + $0x2f] sm:$0xff]
        %v779 = vld [vmem:[%s774 + $0x47] sm:$0xff]
        %v780 = vld [vmem:[%s774 + $0x4f] sm:$0xff]
        %v781 = vld [vmem:[%s774 + $0x67] sm:$0xff]
        %v782 = vld [vmem:[%s774 + $0x6f] sm:$0xff]
        %v783 = vld [vmem:[%s774 + $0x87] sm:$0xff]
        %v784 = vld [vmem:[%s774 + $0x8f] sm:$0xff]
        %v785 = vld [vmem:[%s774 + $0xa7] sm:$0xff]
        %v786 = vld [vmem:[%s774 + $0xaf] sm:$0xff]
        %v787 = vld [vmem:[%s774 + $0xc7] sm:$0xff]
        %v788 = vld [vmem:[%s774 + $0xcf] sm:$0xff]
        %v789 = vld [vmem:[%s774 + $0xe7] sm:$0xff]
        %v790 = vld [vmem:[%s774 + $0xef] sm:$0xff]
        %v791 = vperm.slane %v336, 0
        %v792 = vmul.f32 %v775, %v791
        %v793 = vmul.f32 %v776, %v791
        %v794 = vmul.f32 %v777, %v791
        %v795 = vmul.f32 %v778, %v791
        %v796 = vmul.f32 %v779, %v791
        %v797 = vmul.f32 %v780, %v791
        %v798 = vmul.f32 %v781, %v791
        %v799 = vmul.f32 %v782, %v791
        %v800 = vmul.f32 %v783, %v791
        %v801 = vmul.f32 %v784, %v791
        %v802 = vmul.f32 %v785, %v791
        %v803 = vmul.f32 %v786, %v791
        %v804 = vmul.f32 %v787, %v791
        %v805 = vmul.f32 %v788, %v791
        %v806 = vmul.f32 %v789, %v791
        %v807 = vmul.f32 %v790, %v791
        %v808 = vadd.f32 %v758, %v792
        %v809 = vadd.f32 %v759, %v793
        %v810 = vadd.f32 %v760, %v794
        %v811 = vadd.f32 %v761, %v795
        %v812 = vadd.f32 %v762, %v796
        %v813 = vadd.f32 %v763, %v797
        %v814 = vadd.f32 %v764, %v798
        %v815 = vadd.f32 %v765, %v799
        %v816 = vadd.f32 %v766, %v800
        %v817 = vadd.f32 %v767, %v801
        %v818 = vadd.f32 %v768, %v802
        %v819 = vadd.f32 %v769, %v803
        %v820 = vadd.f32 %v770, %v804
        %v821 = vadd.f32 %v771, %v805
        %v822 = vadd.f32 %v772, %v806
        %v823 = vadd.f32 %v773, %v807
        %v824 = vld [vmem:[%s774 + $0x8] sm:$0xff]
        %v825 = vld [vmem:[%s774 + $0x10] sm:$0xff]
        %v826 = vld [vmem:[%s774 + $0x28] sm:$0xff]
        %v827 = vld [vmem:[%s774 + $0x30] sm:$0xff]
        %v828 = vld [vmem:[%s774 + $0x48] sm:$0xff]
        %v829 = vld [vmem:[%s774 + $0x50] sm:$0xff]
        %v830 = vld [vmem:[%s774 + $0x68] sm:$0xff]
        %v831 = vld [vmem:[%s774 + $0x70] sm:$0xff]
        %v832 = vld [vmem:[%s774 + $0x88] sm:$0xff]
        %v833 = vld [vmem:[%s774 + $0x90] sm:$0xff]
        %v834 = vld [vmem:[%s774 + $0xa8] sm:$0xff]
        %v835 = vld [vmem:[%s774 + $0xb0] sm:$0xff]
        %v836 = vld [vmem:[%s774 + $0xc8] sm:$0xff]
        %v837 = vld [vmem:[%s774 + $0xd0] sm:$0xff]
        %v838 = vld [vmem:[%s774 + $0xe8] sm:$0xff]
        %v839 = vld [vmem:[%s774 + $0xf0] sm:$0xff]
        %v840 = vperm.slane %v336, 1
        %v841 = vmul.f32 %v824, %v840
        %v842 = vmul.f32 %v825, %v840
        %v843 = vmul.f32 %v826, %v840
        %v844 = vmul.f32 %v827, %v840
        %v845 = vmul.f32 %v828, %v840
        %v846 = vmul.f32 %v829, %v840
        %v847 = vmul.f32 %v830, %v840
        %v848 = vmul.f32 %v831, %v840
        %v849 = vmul.f32 %v832, %v840
        %v850 = vmul.f32 %v833, %v840
        %v851 = vmul.f32 %v834, %v840
        %v852 = vmul.f32 %v835, %v840
        %v853 = vmul.f32 %v836, %v840
        %v854 = vmul.f32 %v837, %v840
        %v855 = vmul.f32 %v838, %v840
        %v856 = vmul.f32 %v839, %v840
        %v857 = vadd.f32 %v808, %v841
        %v858 = vadd.f32 %v809, %v842
        %v859 = vadd.f32 %v810, %v843
        %v860 = vadd.f32 %v811, %v844
        %v861 = vadd.f32 %v812, %v845
        %v862 = vadd.f32 %v813, %v846
        %v863 = vadd.f32 %v814, %v847
        %v864 = vadd.f32 %v815, %v848
        %v865 = vadd.f32 %v816, %v849
        %v866 = vadd.f32 %v817, %v850
        %v867 = vadd.f32 %v818, %v851
        %v868 = vadd.f32 %v819, %v852
        %v869 = vadd.f32 %v820, %v853
        %v870 = vadd.f32 %v821, %v854
        %v871 = vadd.f32 %v822, %v855
        %v872 = vadd.f32 %v823, %v856
        %v873 = vld [vmem:[%s774 + $0x9] sm:$0xff]
        %v874 = vld [vmem:[%s774 + $0x11] sm:$0xff]
        %v875 = vld [vmem:[%s774 + $0x29] sm:$0xff]
        %v876 = vld [vmem:[%s774 + $0x31] sm:$0xff]
        %v877 = vld [vmem:[%s774 + $0x49] sm:$0xff]
        %v878 = vld [vmem:[%s774 + $0x51] sm:$0xff]
        %v879 = vld [vmem:[%s774 + $0x69] sm:$0xff]
        %v880 = vld [vmem:[%s774 + $0x71] sm:$0xff]
        %v881 = vld [vmem:[%s774 + $0x89] sm:$0xff]
        %v882 = vld [vmem:[%s774 + $0x91] sm:$0xff]
        %v883 = vld [vmem:[%s774 + $0xa9] sm:$0xff]
        %v884 = vld [vmem:[%s774 + $0xb1] sm:$0xff]
        %v885 = vld [vmem:[%s774 + $0xc9] sm:$0xff]
        %v886 = vld [vmem:[%s774 + $0xd1] sm:$0xff]
        %v887 = vld [vmem:[%s774 + $0xe9] sm:$0xff]
        %v888 = vld [vmem:[%s774 + $0xf1] sm:$0xff]
        %v889 = vperm.slane %v336, 2
        %v890 = vmul.f32 %v873, %v889
        %v891 = vmul.f32 %v874, %v889
        %v892 = vmul.f32 %v875, %v889
        %v893 = vmul.f32 %v876, %v889
        %v894 = vmul.f32 %v877, %v889
        %v895 = vmul.f32 %v878, %v889
        %v896 = vmul.f32 %v879, %v889
        %v897 = vmul.f32 %v880, %v889
        %v898 = vmul.f32 %v881, %v889
        %v899 = vmul.f32 %v882, %v889
        %v900 = vmul.f32 %v883, %v889
        %v901 = vmul.f32 %v884, %v889
        %v902 = vmul.f32 %v885, %v889
        %v903 = vmul.f32 %v886, %v889
        %v904 = vmul.f32 %v887, %v889
        %v905 = vmul.f32 %v888, %v889
        %v906 = vadd.f32 %v857, %v890
        %v907 = vadd.f32 %v858, %v891
        %v908 = vadd.f32 %v859, %v892
        %v909 = vadd.f32 %v860, %v893
        %v910 = vadd.f32 %v861, %v894
        %v911 = vadd.f32 %v862, %v895
        %v912 = vadd.f32 %v863, %v896
        %v913 = vadd.f32 %v864, %v897
        %v914 = vadd.f32 %v865, %v898
        %v915 = vadd.f32 %v866, %v899
        %v916 = vadd.f32 %v867, %v900
        %v917 = vadd.f32 %v868, %v901
        %v918 = vadd.f32 %v869, %v902
        %v919 = vadd.f32 %v870, %v903
        %v920 = vadd.f32 %v871, %v904
        %v921 = vadd.f32 %v872, %v905
        %v923 = vperm.slane %v337, 0
        %v925 = vadd.f32 %v906, %v923
        %v926 = vadd.f32 %v907, %v923
        %v927 = vadd.f32 %v908, %v923
        %v928 = vadd.f32 %v909, %v923
        %v929 = vadd.f32 %v910, %v923
        %v930 = vadd.f32 %v911, %v923
        %v931 = vadd.f32 %v912, %v923
        %v932 = vadd.f32 %v913, %v923
        %v933 = vadd.f32 %v914, %v923
        %v934 = vadd.f32 %v915, %v923
        %v935 = vadd.f32 %v916, %v923
        %v936 = vadd.f32 %v917, %v923
        %v937 = vadd.f32 %v918, %v923
        %v938 = vadd.f32 %v919, %v923
        %v939 = vadd.f32 %v920, %v923
        %v940 = vadd.f32 %v921, %v923
        %v941 = vpack.c.bf16 %v926, %v925
        %v942 = vpack.c.bf16 %v928, %v927
        %v943 = vpack.c.bf16 %v930, %v929
        %v944 = vpack.c.bf16 %v932, %v931
        %v945 = vpack.c.bf16 %v934, %v933
        %v946 = vpack.c.bf16 %v936, %v935
        %v947 = vpack.c.bf16 %v938, %v937
        %v948 = vpack.c.bf16 %v940, %v939
        %v950 = vperm.slane %v333, 0
        %v953 = vsel %vm338, %v941, 0
        %v956 = vsel %vm338, %v942, 0
        %v959 = vsel %vm338, %v943, 0
        %v962 = vsel %vm338, %v944, 0
        %v965 = vsel %vm338, %v945, 0
        %v968 = vsel %vm338, %v946, 0
        %v971 = vsel %vm338, %v947, 0
        %v974 = vsel %vm338, %v948, 0
        %vm976 = vcmask 1043456
        %v978 = vsel %vm976, %v332, 0
        %980 = vmatpush.bf16.msra.mxu0 0
        %981 = vmatpush.bf16.msra.mxu0 0
        %982 = vmatpush.bf16.msra.mxu0 0
        %983 = vmatpush.bf16.msra.mxu0 0
        %984 = vmatpush.bf16.msra.mxu0 0
        %985 = vmatpush.bf16.msra.mxu0 0
        %986 = vmatpush.bf16.msra.mxu0 0
        %987 = vmatpush.bf16.msra.mxu0 %v978
        %988 = vmatmul.bf16.gmra.mxu0 %v953
        %v989 = vpop.f32.mrf.mxu0
        %v990 = vadd.f32 %v950, %v989
        %v991 = vpop.f32.mrf.mxu0
        %v992 = vadd.f32 %v950, %v991
        %993 = vmatmul.bf16.gmra.mxu0 %v956
        %v994 = vpop.f32.mrf.mxu0
        %v995 = vadd.f32 %v950, %v994
        %v996 = vpop.f32.mrf.mxu0
        %v997 = vadd.f32 %v950, %v996
        %998 = vmatmul.bf16.gmra.mxu0 %v959
        %v999 = vpop.f32.mrf.mxu0
        %v1000 = vadd.f32 %v950, %v999
        %v1001 = vpop.f32.mrf.mxu0
        %v1002 = vadd.f32 %v950, %v1001
        %1003 = vmatmul.bf16.gmra.mxu0 %v962
        %v1004 = vpop.f32.mrf.mxu0
        %v1005 = vadd.f32 %v950, %v1004
        %v1006 = vpop.f32.mrf.mxu0
        %v1007 = vadd.f32 %v950, %v1006
        %1008 = vmatmul.bf16.gmra.mxu0 %v965
        %v1009 = vpop.f32.mrf.mxu0
        %v1010 = vadd.f32 %v950, %v1009
        %v1011 = vpop.f32.mrf.mxu0
        %v1012 = vadd.f32 %v950, %v1011
        %1013 = vmatmul.bf16.gmra.mxu0 %v968
        %v1014 = vpop.f32.mrf.mxu0
        %v1015 = vadd.f32 %v950, %v1014
        %v1016 = vpop.f32.mrf.mxu0
        %v1017 = vadd.f32 %v950, %v1016
        %1018 = vmatmul.bf16.gmra.mxu0 %v971
        %v1019 = vpop.f32.mrf.mxu0
        %v1020 = vadd.f32 %v950, %v1019
        %v1021 = vpop.f32.mrf.mxu0
        %v1022 = vadd.f32 %v950, %v1021
        %1023 = vmatmul.bf16.gmra.mxu0 %v974
        %v1024 = vpop.f32.mrf.mxu0
        %v1025 = vadd.f32 %v950, %v1024
        %v1026 = vpop.f32.mrf.mxu0
        %v1027 = vadd.f32 %v950, %v1026
        %1028 = vdwg.mxu0
        %v1029 = vmax.f32 %v990, 0.0
        %v1030 = vmax.f32 %v992, 0.0
        %v1031 = vmax.f32 %v995, 0.0
        %v1032 = vmax.f32 %v997, 0.0
        %v1033 = vmax.f32 %v1000, 0.0
        %v1034 = vmax.f32 %v1002, 0.0
        %v1035 = vmax.f32 %v1005, 0.0
        %v1036 = vmax.f32 %v1007, 0.0
        %v1037 = vmax.f32 %v1010, 0.0
        %v1038 = vmax.f32 %v1012, 0.0
        %v1039 = vmax.f32 %v1015, 0.0
        %v1040 = vmax.f32 %v1017, 0.0
        %v1041 = vmax.f32 %v1020, 0.0
        %v1042 = vmax.f32 %v1022, 0.0
        %v1043 = vmax.f32 %v1025, 0.0
        %v1044 = vmax.f32 %v1027, 0.0
        %v1045 = vmin.f32 %v1029, 6.0
        %v1046 = vmin.f32 %v1030, 6.0
        %v1047 = vmin.f32 %v1031, 6.0
        %v1048 = vmin.f32 %v1032, 6.0
        %v1049 = vmin.f32 %v1033, 6.0
        %v1050 = vmin.f32 %v1034, 6.0
        %v1051 = vmin.f32 %v1035, 6.0
        %v1052 = vmin.f32 %v1036, 6.0
        %v1053 = vmin.f32 %v1037, 6.0
        %v1054 = vmin.f32 %v1038, 6.0
        %v1055 = vmin.f32 %v1039, 6.0
        %v1056 = vmin.f32 %v1040, 6.0
        %v1057 = vmin.f32 %v1041, 6.0
        %v1058 = vmin.f32 %v1042, 6.0
        %v1059 = vmin.f32 %v1043, 6.0
        %v1060 = vmin.f32 %v1044, 6.0
        %1061 = vst.msk [vmem:[%s463 + $0x8] sm:$0xff] %vm452, %v1045
        %1062 = vst.msk [vmem:[%s463 + $0x10] sm:$0xff] %vm452, %v1046
        %1063 = vst.msk [vmem:[%s463 + $0x28] sm:$0xff] %vm452, %v1047
        %1064 = vst.msk [vmem:[%s463 + $0x30] sm:$0xff] %vm452, %v1048
        %1065 = vst.msk [vmem:[%s463 + $0x48] sm:$0xff] %vm452, %v1049
        %1066 = vst.msk [vmem:[%s463 + $0x50] sm:$0xff] %vm452, %v1050
        %1067 = vst.msk [vmem:[%s463 + $0x68] sm:$0xff] %vm452, %v1051
        %1068 = vst.msk [vmem:[%s463 + $0x70] sm:$0xff] %vm452, %v1052
        %1069 = vst.msk [vmem:[%s463 + $0x88] sm:$0xff] %vm452, %v1053
        %1070 = vst.msk [vmem:[%s463 + $0x90] sm:$0xff] %vm452, %v1054
        %1071 = vst.msk [vmem:[%s463 + $0xa8] sm:$0xff] %vm452, %v1055
        %1072 = vst.msk [vmem:[%s463 + $0xb0] sm:$0xff] %vm452, %v1056
        %1073 = vst.msk [vmem:[%s463 + $0xc8] sm:$0xff] %vm452, %v1057
        %1074 = vst.msk [vmem:[%s463 + $0xd0] sm:$0xff] %vm452, %v1058
        %1075 = vst.msk [vmem:[%s463 + $0xe8] sm:$0xff] %vm452, %v1059
        %1076 = vst.msk [vmem:[%s463 + $0xf0] sm:$0xff] %vm452, %v1060
        %s1077 = scalar_lea.vmem [#allocation2], 256
        %v1078 = vld [vmem:[%s1077 + $0x7] sm:$0xff]
        %v1079 = vld [vmem:[%s1077 + $0xf] sm:$0xff]
        %v1080 = vld [vmem:[%s1077 + $0x27] sm:$0xff]
        %v1081 = vld [vmem:[%s1077 + $0x2f] sm:$0xff]
        %v1082 = vld [vmem:[%s1077 + $0x47] sm:$0xff]
        %v1083 = vld [vmem:[%s1077 + $0x4f] sm:$0xff]
        %v1084 = vld [vmem:[%s1077 + $0x67] sm:$0xff]
        %v1085 = vld [vmem:[%s1077 + $0x6f] sm:$0xff]
        %v1086 = vld [vmem:[%s1077 + $0x87] sm:$0xff]
        %v1087 = vld [vmem:[%s1077 + $0x8f] sm:$0xff]
        %v1088 = vld [vmem:[%s1077 + $0xa7] sm:$0xff]
        %v1089 = vld [vmem:[%s1077 + $0xaf] sm:$0xff]
        %v1090 = vld [vmem:[%s1077 + $0xc7] sm:$0xff]
        %v1091 = vld [vmem:[%s1077 + $0xcf] sm:$0xff]
        %v1092 = vld [vmem:[%s1077 + $0xe7] sm:$0xff]
        %v1093 = vld [vmem:[%s1077 + $0xef] sm:$0xff]
        %v1094 = vmul.f32 %v1078, %v512
        %v1095 = vmul.f32 %v1079, %v512
        %v1096 = vmul.f32 %v1080, %v512
        %v1097 = vmul.f32 %v1081, %v512
        %v1098 = vmul.f32 %v1082, %v512
        %v1099 = vmul.f32 %v1083, %v512
        %v1100 = vmul.f32 %v1084, %v512
        %v1101 = vmul.f32 %v1085, %v512
        %v1102 = vmul.f32 %v1086, %v512
        %v1103 = vmul.f32 %v1087, %v512
        %v1104 = vmul.f32 %v1088, %v512
        %v1105 = vmul.f32 %v1089, %v512
        %v1106 = vmul.f32 %v1090, %v512
        %v1107 = vmul.f32 %v1091, %v512
        %v1108 = vmul.f32 %v1092, %v512
        %v1109 = vmul.f32 %v1093, %v512
        %v1110 = vld [vmem:[%s1077 + $0x8] sm:$0xff]
        %v1111 = vld [vmem:[%s1077 + $0x10] sm:$0xff]
        %v1112 = vld [vmem:[%s1077 + $0x28] sm:$0xff]
        %v1113 = vld [vmem:[%s1077 + $0x30] sm:$0xff]
        %v1114 = vld [vmem:[%s1077 + $0x48] sm:$0xff]
        %v1115 = vld [vmem:[%s1077 + $0x50] sm:$0xff]
        %v1116 = vld [vmem:[%s1077 + $0x68] sm:$0xff]
        %v1117 = vld [vmem:[%s1077 + $0x70] sm:$0xff]
        %v1118 = vld [vmem:[%s1077 + $0x88] sm:$0xff]
        %v1119 = vld [vmem:[%s1077 + $0x90] sm:$0xff]
        %v1120 = vld [vmem:[%s1077 + $0xa8] sm:$0xff]
        %v1121 = vld [vmem:[%s1077 + $0xb0] sm:$0xff]
        %v1122 = vld [vmem:[%s1077 + $0xc8] sm:$0xff]
        %v1123 = vld [vmem:[%s1077 + $0xd0] sm:$0xff]
        %v1124 = vld [vmem:[%s1077 + $0xe8] sm:$0xff]
        %v1125 = vld [vmem:[%s1077 + $0xf0] sm:$0xff]
        %v1126 = vmul.f32 %v1110, %v545
        %v1127 = vmul.f32 %v1111, %v545
        %v1128 = vmul.f32 %v1112, %v545
        %v1129 = vmul.f32 %v1113, %v545
        %v1130 = vmul.f32 %v1114, %v545
        %v1131 = vmul.f32 %v1115, %v545
        %v1132 = vmul.f32 %v1116, %v545
        %v1133 = vmul.f32 %v1117, %v545
        %v1134 = vmul.f32 %v1118, %v545
        %v1135 = vmul.f32 %v1119, %v545
        %v1136 = vmul.f32 %v1120, %v545
        %v1137 = vmul.f32 %v1121, %v545
        %v1138 = vmul.f32 %v1122, %v545
        %v1139 = vmul.f32 %v1123, %v545
        %v1140 = vmul.f32 %v1124, %v545
        %v1141 = vmul.f32 %v1125, %v545
        %v1142 = vadd.f32 %v1094, %v1126
        %v1143 = vadd.f32 %v1095, %v1127
        %v1144 = vadd.f32 %v1096, %v1128
        %v1145 = vadd.f32 %v1097, %v1129
        %v1146 = vadd.f32 %v1098, %v1130
        %v1147 = vadd.f32 %v1099, %v1131
        %v1148 = vadd.f32 %v1100, %v1132
        %v1149 = vadd.f32 %v1101, %v1133
        %v1150 = vadd.f32 %v1102, %v1134
        %v1151 = vadd.f32 %v1103, %v1135
        %v1152 = vadd.f32 %v1104, %v1136
        %v1153 = vadd.f32 %v1105, %v1137
        %v1154 = vadd.f32 %v1106, %v1138
        %v1155 = vadd.f32 %v1107, %v1139
        %v1156 = vadd.f32 %v1108, %v1140
        %v1157 = vadd.f32 %v1109, %v1141
        %v1158 = vld [vmem:[%s1077 + $0x9] sm:$0xff]
        %v1159 = vld [vmem:[%s1077 + $0x11] sm:$0xff]
        %v1160 = vld [vmem:[%s1077 + $0x29] sm:$0xff]
        %v1161 = vld [vmem:[%s1077 + $0x31] sm:$0xff]
        %v1162 = vld [vmem:[%s1077 + $0x49] sm:$0xff]
        %v1163 = vld [vmem:[%s1077 + $0x51] sm:$0xff]
        %v1164 = vld [vmem:[%s1077 + $0x69] sm:$0xff]
        %v1165 = vld [vmem:[%s1077 + $0x71] sm:$0xff]
        %v1166 = vld [vmem:[%s1077 + $0x89] sm:$0xff]
        %v1167 = vld [vmem:[%s1077 + $0x91] sm:$0xff]
        %v1168 = vld [vmem:[%s1077 + $0xa9] sm:$0xff]
        %v1169 = vld [vmem:[%s1077 + $0xb1] sm:$0xff]
        %v1170 = vld [vmem:[%s1077 + $0xc9] sm:$0xff]
        %v1171 = vld [vmem:[%s1077 + $0xd1] sm:$0xff]
        %v1172 = vld [vmem:[%s1077 + $0xe9] sm:$0xff]
        %v1173 = vld [vmem:[%s1077 + $0xf1] sm:$0xff]
        %v1174 = vmul.f32 %v1158, %v594
        %v1175 = vmul.f32 %v1159, %v594
        %v1176 = vmul.f32 %v1160, %v594
        %v1177 = vmul.f32 %v1161, %v594
        %v1178 = vmul.f32 %v1162, %v594
        %v1179 = vmul.f32 %v1163, %v594
        %v1180 = vmul.f32 %v1164, %v594
        %v1181 = vmul.f32 %v1165, %v594
        %v1182 = vmul.f32 %v1166, %v594
        %v1183 = vmul.f32 %v1167, %v594
        %v1184 = vmul.f32 %v1168, %v594
        %v1185 = vmul.f32 %v1169, %v594
        %v1186 = vmul.f32 %v1170, %v594
        %v1187 = vmul.f32 %v1171, %v594
        %v1188 = vmul.f32 %v1172, %v594
        %v1189 = vmul.f32 %v1173, %v594
        %v1190 = vadd.f32 %v1142, %v1174
        %v1191 = vadd.f32 %v1143, %v1175
        %v1192 = vadd.f32 %v1144, %v1176
        %v1193 = vadd.f32 %v1145, %v1177
        %v1194 = vadd.f32 %v1146, %v1178
        %v1195 = vadd.f32 %v1147, %v1179
        %v1196 = vadd.f32 %v1148, %v1180
        %v1197 = vadd.f32 %v1149, %v1181
        %v1198 = vadd.f32 %v1150, %v1182
        %v1199 = vadd.f32 %v1151, %v1183
        %v1200 = vadd.f32 %v1152, %v1184
        %v1201 = vadd.f32 %v1153, %v1185
        %v1202 = vadd.f32 %v1154, %v1186
        %v1203 = vadd.f32 %v1155, %v1187
        %v1204 = vadd.f32 %v1156, %v1188
        %v1205 = vadd.f32 %v1157, %v1189
        %v1206 = vld [vmem:[%s431 + $0x7] sm:$0xff]
        %v1207 = vld [vmem:[%s431 + $0xf] sm:$0xff]
        %v1208 = vld [vmem:[%s431 + $0x27] sm:$0xff]
        %v1209 = vld [vmem:[%s431 + $0x2f] sm:$0xff]
        %v1210 = vld [vmem:[%s431 + $0x47] sm:$0xff]
        %v1211 = vld [vmem:[%s431 + $0x4f] sm:$0xff]
        %v1212 = vld [vmem:[%s431 + $0x67] sm:$0xff]
        %v1213 = vld [vmem:[%s431 + $0x6f] sm:$0xff]
        %v1214 = vld [vmem:[%s431 + $0x87] sm:$0xff]
        %v1215 = vld [vmem:[%s431 + $0x8f] sm:$0xff]
        %v1216 = vld [vmem:[%s431 + $0xa7] sm:$0xff]
        %v1217 = vld [vmem:[%s431 + $0xaf] sm:$0xff]
        %v1218 = vld [vmem:[%s431 + $0xc7] sm:$0xff]
        %v1219 = vld [vmem:[%s431 + $0xcf] sm:$0xff]
        %v1220 = vld [vmem:[%s431 + $0xe7] sm:$0xff]
        %v1221 = vld [vmem:[%s431 + $0xef] sm:$0xff]
        %v1222 = vmul.f32 %v1206, %v643
        %v1223 = vmul.f32 %v1207, %v643
        %v1224 = vmul.f32 %v1208, %v643
        %v1225 = vmul.f32 %v1209, %v643
        %v1226 = vmul.f32 %v1210, %v643
        %v1227 = vmul.f32 %v1211, %v643
        %v1228 = vmul.f32 %v1212, %v643
        %v1229 = vmul.f32 %v1213, %v643
        %v1230 = vmul.f32 %v1214, %v643
        %v1231 = vmul.f32 %v1215, %v643
        %v1232 = vmul.f32 %v1216, %v643
        %v1233 = vmul.f32 %v1217, %v643
        %v1234 = vmul.f32 %v1218, %v643
        %v1235 = vmul.f32 %v1219, %v643
        %v1236 = vmul.f32 %v1220, %v643
        %v1237 = vmul.f32 %v1221, %v643
        %v1238 = vadd.f32 %v1190, %v1222
        %v1239 = vadd.f32 %v1191, %v1223
        %v1240 = vadd.f32 %v1192, %v1224
        %v1241 = vadd.f32 %v1193, %v1225
        %v1242 = vadd.f32 %v1194, %v1226
        %v1243 = vadd.f32 %v1195, %v1227
        %v1244 = vadd.f32 %v1196, %v1228
        %v1245 = vadd.f32 %v1197, %v1229
        %v1246 = vadd.f32 %v1198, %v1230
        %v1247 = vadd.f32 %v1199, %v1231
        %v1248 = vadd.f32 %v1200, %v1232
        %v1249 = vadd.f32 %v1201, %v1233
        %v1250 = vadd.f32 %v1202, %v1234
        %v1251 = vadd.f32 %v1203, %v1235
        %v1252 = vadd.f32 %v1204, %v1236
        %v1253 = vadd.f32 %v1205, %v1237
        %v1254 = vld [vmem:[%s431 + $0x8] sm:$0xff]
        %v1255 = vld [vmem:[%s431 + $0x10] sm:$0xff]
        %v1256 = vld [vmem:[%s431 + $0x28] sm:$0xff]
        %v1257 = vld [vmem:[%s431 + $0x30] sm:$0xff]
        %v1258 = vld [vmem:[%s431 + $0x48] sm:$0xff]
        %v1259 = vld [vmem:[%s431 + $0x50] sm:$0xff]
        %v1260 = vld [vmem:[%s431 + $0x68] sm:$0xff]
        %v1261 = vld [vmem:[%s431 + $0x70] sm:$0xff]
        %v1262 = vld [vmem:[%s431 + $0x88] sm:$0xff]
        %v1263 = vld [vmem:[%s431 + $0x90] sm:$0xff]
        %v1264 = vld [vmem:[%s431 + $0xa8] sm:$0xff]
        %v1265 = vld [vmem:[%s431 + $0xb0] sm:$0xff]
        %v1266 = vld [vmem:[%s431 + $0xc8] sm:$0xff]
        %v1267 = vld [vmem:[%s431 + $0xd0] sm:$0xff]
        %v1268 = vld [vmem:[%s431 + $0xe8] sm:$0xff]
        %v1269 = vld [vmem:[%s431 + $0xf0] sm:$0xff]
        %v1270 = vmul.f32 %v1254, %v692
        %v1271 = vmul.f32 %v1255, %v692
        %v1272 = vmul.f32 %v1256, %v692
        %v1273 = vmul.f32 %v1257, %v692
        %v1274 = vmul.f32 %v1258, %v692
        %v1275 = vmul.f32 %v1259, %v692
        %v1276 = vmul.f32 %v1260, %v692
        %v1277 = vmul.f32 %v1261, %v692
        %v1278 = vmul.f32 %v1262, %v692
        %v1279 = vmul.f32 %v1263, %v692
        %v1280 = vmul.f32 %v1264, %v692
        %v1281 = vmul.f32 %v1265, %v692
        %v1282 = vmul.f32 %v1266, %v692
        %v1283 = vmul.f32 %v1267, %v692
        %v1284 = vmul.f32 %v1268, %v692
        %v1285 = vmul.f32 %v1269, %v692
        %v1286 = vadd.f32 %v1238, %v1270
        %v1287 = vadd.f32 %v1239, %v1271
        %v1288 = vadd.f32 %v1240, %v1272
        %v1289 = vadd.f32 %v1241, %v1273
        %v1290 = vadd.f32 %v1242, %v1274
        %v1291 = vadd.f32 %v1243, %v1275
        %v1292 = vadd.f32 %v1244, %v1276
        %v1293 = vadd.f32 %v1245, %v1277
        %v1294 = vadd.f32 %v1246, %v1278
        %v1295 = vadd.f32 %v1247, %v1279
        %v1296 = vadd.f32 %v1248, %v1280
        %v1297 = vadd.f32 %v1249, %v1281
        %v1298 = vadd.f32 %v1250, %v1282
        %v1299 = vadd.f32 %v1251, %v1283
        %v1300 = vadd.f32 %v1252, %v1284
        %v1301 = vadd.f32 %v1253, %v1285
        %v1302 = vld [vmem:[%s431 + $0x9] sm:$0xff]
        %v1303 = vld [vmem:[%s431 + $0x11] sm:$0xff]
        %v1304 = vld [vmem:[%s431 + $0x29] sm:$0xff]
        %v1305 = vld [vmem:[%s431 + $0x31] sm:$0xff]
        %v1306 = vld [vmem:[%s431 + $0x49] sm:$0xff]
        %v1307 = vld [vmem:[%s431 + $0x51] sm:$0xff]
        %v1308 = vld [vmem:[%s431 + $0x69] sm:$0xff]
        %v1309 = vld [vmem:[%s431 + $0x71] sm:$0xff]
        %v1310 = vld [vmem:[%s431 + $0x89] sm:$0xff]
        %v1311 = vld [vmem:[%s431 + $0x91] sm:$0xff]
        %v1312 = vld [vmem:[%s431 + $0xa9] sm:$0xff]
        %v1313 = vld [vmem:[%s431 + $0xb1] sm:$0xff]
        %v1314 = vld [vmem:[%s431 + $0xc9] sm:$0xff]
        %v1315 = vld [vmem:[%s431 + $0xd1] sm:$0xff]
        %v1316 = vld [vmem:[%s431 + $0xe9] sm:$0xff]
        %v1317 = vld [vmem:[%s431 + $0xf1] sm:$0xff]
        %v1318 = vmul.f32 %v1302, %v741
        %v1319 = vmul.f32 %v1303, %v741
        %v1320 = vmul.f32 %v1304, %v741
        %v1321 = vmul.f32 %v1305, %v741
        %v1322 = vmul.f32 %v1306, %v741
        %v1323 = vmul.f32 %v1307, %v741
        %v1324 = vmul.f32 %v1308, %v741
        %v1325 = vmul.f32 %v1309, %v741
        %v1326 = vmul.f32 %v1310, %v741
        %v1327 = vmul.f32 %v1311, %v741
        %v1328 = vmul.f32 %v1312, %v741
        %v1329 = vmul.f32 %v1313, %v741
        %v1330 = vmul.f32 %v1314, %v741
        %v1331 = vmul.f32 %v1315, %v741
        %v1332 = vmul.f32 %v1316, %v741
        %v1333 = vmul.f32 %v1317, %v741
        %v1334 = vadd.f32 %v1286, %v1318
        %v1335 = vadd.f32 %v1287, %v1319
        %v1336 = vadd.f32 %v1288, %v1320
        %v1337 = vadd.f32 %v1289, %v1321
        %v1338 = vadd.f32 %v1290, %v1322
        %v1339 = vadd.f32 %v1291, %v1323
        %v1340 = vadd.f32 %v1292, %v1324
        %v1341 = vadd.f32 %v1293, %v1325
        %v1342 = vadd.f32 %v1294, %v1326
        %v1343 = vadd.f32 %v1295, %v1327
        %v1344 = vadd.f32 %v1296, %v1328
        %v1345 = vadd.f32 %v1297, %v1329
        %v1346 = vadd.f32 %v1298, %v1330
        %v1347 = vadd.f32 %v1299, %v1331
        %v1348 = vadd.f32 %v1300, %v1332
        %v1349 = vadd.f32 %v1301, %v1333
        %s1350 = scalar_lea.vmem [#allocation2], 320
        %v1351 = vld [vmem:[%s1350 + $0x7] sm:$0xff]
        %v1352 = vld [vmem:[%s1350 + $0xf] sm:$0xff]
        %v1353 = vld [vmem:[%s1350 + $0x27] sm:$0xff]
        %v1354 = vld [vmem:[%s1350 + $0x2f] sm:$0xff]
        %v1355 = vld [vmem:[%s1350 + $0x47] sm:$0xff]
        %v1356 = vld [vmem:[%s1350 + $0x4f] sm:$0xff]
        %v1357 = vld [vmem:[%s1350 + $0x67] sm:$0xff]
        %v1358 = vld [vmem:[%s1350 + $0x6f] sm:$0xff]
        %v1359 = vld [vmem:[%s1350 + $0x87] sm:$0xff]
        %v1360 = vld [vmem:[%s1350 + $0x8f] sm:$0xff]
        %v1361 = vld [vmem:[%s1350 + $0xa7] sm:$0xff]
        %v1362 = vld [vmem:[%s1350 + $0xaf] sm:$0xff]
        %v1363 = vld [vmem:[%s1350 + $0xc7] sm:$0xff]
        %v1364 = vld [vmem:[%s1350 + $0xcf] sm:$0xff]
        %v1365 = vld [vmem:[%s1350 + $0xe7] sm:$0xff]
        %v1366 = vld [vmem:[%s1350 + $0xef] sm:$0xff]
        %v1367 = vmul.f32 %v1351, %v791
        %v1368 = vmul.f32 %v1352, %v791
        %v1369 = vmul.f32 %v1353, %v791
        %v1370 = vmul.f32 %v1354, %v791
        %v1371 = vmul.f32 %v1355, %v791
        %v1372 = vmul.f32 %v1356, %v791
        %v1373 = vmul.f32 %v1357, %v791
        %v1374 = vmul.f32 %v1358, %v791
        %v1375 = vmul.f32 %v1359, %v791
        %v1376 = vmul.f32 %v1360, %v791
        %v1377 = vmul.f32 %v1361, %v791
        %v1378 = vmul.f32 %v1362, %v791
        %v1379 = vmul.f32 %v1363, %v791
        %v1380 = vmul.f32 %v1364, %v791
        %v1381 = vmul.f32 %v1365, %v791
        %v1382 = vmul.f32 %v1366, %v791
        %v1383 = vadd.f32 %v1334, %v1367
        %v1384 = vadd.f32 %v1335, %v1368
        %v1385 = vadd.f32 %v1336, %v1369
        %v1386 = vadd.f32 %v1337, %v1370
        %v1387 = vadd.f32 %v1338, %v1371
        %v1388 = vadd.f32 %v1339, %v1372
        %v1389 = vadd.f32 %v1340, %v1373
        %v1390 = vadd.f32 %v1341, %v1374
        %v1391 = vadd.f32 %v1342, %v1375
        %v1392 = vadd.f32 %v1343, %v1376
        %v1393 = vadd.f32 %v1344, %v1377
        %v1394 = vadd.f32 %v1345, %v1378
        %v1395 = vadd.f32 %v1346, %v1379
        %v1396 = vadd.f32 %v1347, %v1380
        %v1397 = vadd.f32 %v1348, %v1381
        %v1398 = vadd.f32 %v1349, %v1382
        %v1399 = vld [vmem:[%s1350 + $0x8] sm:$0xff]
        %v1400 = vld [vmem:[%s1350 + $0x10] sm:$0xff]
        %v1401 = vld [vmem:[%s1350 + $0x28] sm:$0xff]
        %v1402 = vld [vmem:[%s1350 + $0x30] sm:$0xff]
        %v1403 = vld [vmem:[%s1350 + $0x48] sm:$0xff]
        %v1404 = vld [vmem:[%s1350 + $0x50] sm:$0xff]
        %v1405 = vld [vmem:[%s1350 + $0x68] sm:$0xff]
        %v1406 = vld [vmem:[%s1350 + $0x70] sm:$0xff]
        %v1407 = vld [vmem:[%s1350 + $0x88] sm:$0xff]
        %v1408 = vld [vmem:[%s1350 + $0x90] sm:$0xff]
        %v1409 = vld [vmem:[%s1350 + $0xa8] sm:$0xff]
        %v1410 = vld [vmem:[%s1350 + $0xb0] sm:$0xff]
        %v1411 = vld [vmem:[%s1350 + $0xc8] sm:$0xff]
        %v1412 = vld [vmem:[%s1350 + $0xd0] sm:$0xff]
        %v1413 = vld [vmem:[%s1350 + $0xe8] sm:$0xff]
        %v1414 = vld [vmem:[%s1350 + $0xf0] sm:$0xff]
        %v1415 = vmul.f32 %v1399, %v840
        %v1416 = vmul.f32 %v1400, %v840
        %v1417 = vmul.f32 %v1401, %v840
        %v1418 = vmul.f32 %v1402, %v840
        %v1419 = vmul.f32 %v1403, %v840
        %v1420 = vmul.f32 %v1404, %v840
        %v1421 = vmul.f32 %v1405, %v840
        %v1422 = vmul.f32 %v1406, %v840
        %v1423 = vmul.f32 %v1407, %v840
        %v1424 = vmul.f32 %v1408, %v840
        %v1425 = vmul.f32 %v1409, %v840
        %v1426 = vmul.f32 %v1410, %v840
        %v1427 = vmul.f32 %v1411, %v840
        %v1428 = vmul.f32 %v1412, %v840
        %v1429 = vmul.f32 %v1413, %v840
        %v1430 = vmul.f32 %v1414, %v840
        %v1431 = vadd.f32 %v1383, %v1415
        %v1432 = vadd.f32 %v1384, %v1416
        %v1433 = vadd.f32 %v1385, %v1417
        %v1434 = vadd.f32 %v1386, %v1418
        %v1435 = vadd.f32 %v1387, %v1419
        %v1436 = vadd.f32 %v1388, %v1420
        %v1437 = vadd.f32 %v1389, %v1421
        %v1438 = vadd.f32 %v1390, %v1422
        %v1439 = vadd.f32 %v1391, %v1423
        %v1440 = vadd.f32 %v1392, %v1424
        %v1441 = vadd.f32 %v1393, %v1425
        %v1442 = vadd.f32 %v1394, %v1426
        %v1443 = vadd.f32 %v1395, %v1427
        %v1444 = vadd.f32 %v1396, %v1428
        %v1445 = vadd.f32 %v1397, %v1429
        %v1446 = vadd.f32 %v1398, %v1430
        %v1447 = vld [vmem:[%s1350 + $0x9] sm:$0xff]
        %v1448 = vld [vmem:[%s1350 + $0x11] sm:$0xff]
        %v1449 = vld [vmem:[%s1350 + $0x29] sm:$0xff]
        %v1450 = vld [vmem:[%s1350 + $0x31] sm:$0xff]
        %v1451 = vld [vmem:[%s1350 + $0x49] sm:$0xff]
        %v1452 = vld [vmem:[%s1350 + $0x51] sm:$0xff]
        %v1453 = vld [vmem:[%s1350 + $0x69] sm:$0xff]
        %v1454 = vld [vmem:[%s1350 + $0x71] sm:$0xff]
        %v1455 = vld [vmem:[%s1350 + $0x89] sm:$0xff]
        %v1456 = vld [vmem:[%s1350 + $0x91] sm:$0xff]
        %v1457 = vld [vmem:[%s1350 + $0xa9] sm:$0xff]
        %v1458 = vld [vmem:[%s1350 + $0xb1] sm:$0xff]
        %v1459 = vld [vmem:[%s1350 + $0xc9] sm:$0xff]
        %v1460 = vld [vmem:[%s1350 + $0xd1] sm:$0xff]
        %v1461 = vld [vmem:[%s1350 + $0xe9] sm:$0xff]
        %v1462 = vld [vmem:[%s1350 + $0xf1] sm:$0xff]
        %v1463 = vmul.f32 %v1447, %v889
        %v1464 = vmul.f32 %v1448, %v889
        %v1465 = vmul.f32 %v1449, %v889
        %v1466 = vmul.f32 %v1450, %v889
        %v1467 = vmul.f32 %v1451, %v889
        %v1468 = vmul.f32 %v1452, %v889
        %v1469 = vmul.f32 %v1453, %v889
        %v1470 = vmul.f32 %v1454, %v889
        %v1471 = vmul.f32 %v1455, %v889
        %v1472 = vmul.f32 %v1456, %v889
        %v1473 = vmul.f32 %v1457, %v889
        %v1474 = vmul.f32 %v1458, %v889
        %v1475 = vmul.f32 %v1459, %v889
        %v1476 = vmul.f32 %v1460, %v889
        %v1477 = vmul.f32 %v1461, %v889
        %v1478 = vmul.f32 %v1462, %v889
        %v1479 = vadd.f32 %v1431, %v1463
        %v1480 = vadd.f32 %v1432, %v1464
        %v1481 = vadd.f32 %v1433, %v1465
        %v1482 = vadd.f32 %v1434, %v1466
        %v1483 = vadd.f32 %v1435, %v1467
        %v1484 = vadd.f32 %v1436, %v1468
        %v1485 = vadd.f32 %v1437, %v1469
        %v1486 = vadd.f32 %v1438, %v1470
        %v1487 = vadd.f32 %v1439, %v1471
        %v1488 = vadd.f32 %v1440, %v1472
        %v1489 = vadd.f32 %v1441, %v1473
        %v1490 = vadd.f32 %v1442, %v1474
        %v1491 = vadd.f32 %v1443, %v1475
        %v1492 = vadd.f32 %v1444, %v1476
        %v1493 = vadd.f32 %v1445, %v1477
        %v1494 = vadd.f32 %v1446, %v1478
        %v1495 = vadd.f32 %v1479, %v923
        %v1496 = vadd.f32 %v1480, %v923
        %v1497 = vadd.f32 %v1481, %v923
        %v1498 = vadd.f32 %v1482, %v923
        %v1499 = vadd.f32 %v1483, %v923
        %v1500 = vadd.f32 %v1484, %v923
        %v1501 = vadd.f32 %v1485, %v923
        %v1502 = vadd.f32 %v1486, %v923
        %v1503 = vadd.f32 %v1487, %v923
        %v1504 = vadd.f32 %v1488, %v923
        %v1505 = vadd.f32 %v1489, %v923
        %v1506 = vadd.f32 %v1490, %v923
        %v1507 = vadd.f32 %v1491, %v923
        %v1508 = vadd.f32 %v1492, %v923
        %v1509 = vadd.f32 %v1493, %v923
        %v1510 = vadd.f32 %v1494, %v923
        %v1511 = vpack.c.bf16 %v1496, %v1495
        %v1512 = vpack.c.bf16 %v1498, %v1497
        %v1513 = vpack.c.bf16 %v1500, %v1499
        %v1514 = vpack.c.bf16 %v1502, %v1501
        %v1515 = vpack.c.bf16 %v1504, %v1503
        %v1516 = vpack.c.bf16 %v1506, %v1505
        %v1517 = vpack.c.bf16 %v1508, %v1507
        %v1518 = vpack.c.bf16 %v1510, %v1509
        %v1520 = vsel %vm338, %v1511, 0
        %v1523 = vsel %vm338, %v1512, 0
        %v1526 = vsel %vm338, %v1513, 0
        %v1529 = vsel %vm338, %v1514, 0
        %v1532 = vsel %vm338, %v1515, 0
        %v1535 = vsel %vm338, %v1516, 0
        %v1538 = vsel %vm338, %v1517, 0
        %v1541 = vsel %vm338, %v1518, 0
        %1543 = vmatpush.bf16.msra.mxu0 0
        %1544 = vmatpush.bf16.msra.mxu0 0
        %1545 = vmatpush.bf16.msra.mxu0 0
        %1546 = vmatpush.bf16.msra.mxu0 0
        %1547 = vmatpush.bf16.msra.mxu0 0
        %1548 = vmatpush.bf16.msra.mxu0 0
        %1549 = vmatpush.bf16.msra.mxu0 0
        %1550 = vmatpush.bf16.msra.mxu0 %v978
        %1551 = vmatmul.bf16.gmra.mxu0 %v1520
        %v1552 = vpop.f32.mrf.mxu0
        %v1553 = vadd.f32 %v950, %v1552
        %v1554 = vpop.f32.mrf.mxu0
        %v1555 = vadd.f32 %v950, %v1554
        %1556 = vmatmul.bf16.gmra.mxu0 %v1523
        %v1557 = vpop.f32.mrf.mxu0
        %v1558 = vadd.f32 %v950, %v1557
        %v1559 = vpop.f32.mrf.mxu0
        %v1560 = vadd.f32 %v950, %v1559
        %1561 = vmatmul.bf16.gmra.mxu0 %v1526
        %v1562 = vpop.f32.mrf.mxu0
        %v1563 = vadd.f32 %v950, %v1562
        %v1564 = vpop.f32.mrf.mxu0
        %v1565 = vadd.f32 %v950, %v1564
        %1566 = vmatmul.bf16.gmra.mxu0 %v1529
        %v1567 = vpop.f32.mrf.mxu0
        %v1568 = vadd.f32 %v950, %v1567
        %v1569 = vpop.f32.mrf.mxu0
        %v1570 = vadd.f32 %v950, %v1569
        %1571 = vmatmul.bf16.gmra.mxu0 %v1532
        %v1572 = vpop.f32.mrf.mxu0
        %v1573 = vadd.f32 %v950, %v1572
        %v1574 = vpop.f32.mrf.mxu0
        %v1575 = vadd.f32 %v950, %v1574
        %1576 = vmatmul.bf16.gmra.mxu0 %v1535
        %v1577 = vpop.f32.mrf.mxu0
        %v1578 = vadd.f32 %v950, %v1577
        %v1579 = vpop.f32.mrf.mxu0
        %v1580 = vadd.f32 %v950, %v1579
        %1581 = vmatmul.bf16.gmra.mxu0 %v1538
        %v1582 = vpop.f32.mrf.mxu0
        %v1583 = vadd.f32 %v950, %v1582
        %v1584 = vpop.f32.mrf.mxu0
        %v1585 = vadd.f32 %v950, %v1584
        %1586 = vmatmul.bf16.gmra.mxu0 %v1541
        %v1587 = vpop.f32.mrf.mxu0
        %v1588 = vadd.f32 %v950, %v1587
        %v1589 = vpop.f32.mrf.mxu0
        %v1590 = vadd.f32 %v950, %v1589
        %1591 = vdwg.mxu0
        %v1592 = vmax.f32 %v1553, 0.0
        %v1593 = vmax.f32 %v1555, 0.0
        %v1594 = vmax.f32 %v1558, 0.0
        %v1595 = vmax.f32 %v1560, 0.0
        %v1596 = vmax.f32 %v1563, 0.0
        %v1597 = vmax.f32 %v1565, 0.0
        %v1598 = vmax.f32 %v1568, 0.0
        %v1599 = vmax.f32 %v1570, 0.0
        %v1600 = vmax.f32 %v1573, 0.0
        %v1601 = vmax.f32 %v1575, 0.0
        %v1602 = vmax.f32 %v1578, 0.0
        %v1603 = vmax.f32 %v1580, 0.0
        %v1604 = vmax.f32 %v1583, 0.0
        %v1605 = vmax.f32 %v1585, 0.0
        %v1606 = vmax.f32 %v1588, 0.0
        %v1607 = vmax.f32 %v1590, 0.0
        %v1608 = vmin.f32 %v1592, 6.0
        %v1609 = vmin.f32 %v1593, 6.0
        %v1610 = vmin.f32 %v1594, 6.0
        %v1611 = vmin.f32 %v1595, 6.0
        %v1612 = vmin.f32 %v1596, 6.0
        %v1613 = vmin.f32 %v1597, 6.0
        %v1614 = vmin.f32 %v1598, 6.0
        %v1615 = vmin.f32 %v1599, 6.0
        %v1616 = vmin.f32 %v1600, 6.0
        %v1617 = vmin.f32 %v1601, 6.0
        %v1618 = vmin.f32 %v1602, 6.0
        %v1619 = vmin.f32 %v1603, 6.0
        %v1620 = vmin.f32 %v1604, 6.0
        %v1621 = vmin.f32 %v1605, 6.0
        %v1622 = vmin.f32 %v1606, 6.0
        %v1623 = vmin.f32 %v1607, 6.0
        %s1624 = scalar_lea.vmem [#allocation3], 288
        %1625 = vst.msk [vmem:[%s1624 + $0x8] sm:$0xff] %vm452, %v1608
        %1626 = vst.msk [vmem:[%s1624 + $0x10] sm:$0xff] %vm452, %v1609
        %1627 = vst.msk [vmem:[%s1624 + $0x28] sm:$0xff] %vm452, %v1610
        %1628 = vst.msk [vmem:[%s1624 + $0x30] sm:$0xff] %vm452, %v1611
        %1629 = vst.msk [vmem:[%s1624 + $0x48] sm:$0xff] %vm452, %v1612
        %1630 = vst.msk [vmem:[%s1624 + $0x50] sm:$0xff] %vm452, %v1613
        %1631 = vst.msk [vmem:[%s1624 + $0x68] sm:$0xff] %vm452, %v1614
        %1632 = vst.msk [vmem:[%s1624 + $0x70] sm:$0xff] %vm452, %v1615
        %1633 = vst.msk [vmem:[%s1624 + $0x88] sm:$0xff] %vm452, %v1616
        %1634 = vst.msk [vmem:[%s1624 + $0x90] sm:$0xff] %vm452, %v1617
        %1635 = vst.msk [vmem:[%s1624 + $0xa8] sm:$0xff] %vm452, %v1618
        %1636 = vst.msk [vmem:[%s1624 + $0xb0] sm:$0xff] %vm452, %v1619
        %1637 = vst.msk [vmem:[%s1624 + $0xc8] sm:$0xff] %vm452, %v1620
        %1638 = vst.msk [vmem:[%s1624 + $0xd0] sm:$0xff] %vm452, %v1621
        %1639 = vst.msk [vmem:[%s1624 + $0xe8] sm:$0xff] %vm452, %v1622
        %1640 = vst.msk [vmem:[%s1624 + $0xf0] sm:$0xff] %vm452, %v1623
        %s1641 = scalar_lea.vmem [#allocation3], 7
        %v1642 = vld [vmem:[%s1641] ss:$2 sm:$0xff]
        %s1643 = scalar_lea.vmem [#allocation3], 71
        %v1644 = vld [vmem:[%s1643] ss:$2 sm:$0xff]
        %s1645 = scalar_lea.vmem [#allocation3], 135
        %v1646 = vld [vmem:[%s1645] ss:$2 sm:$0xff]
        %s1647 = scalar_lea.vmem [#allocation3], 199
        %v1648 = vld [vmem:[%s1647] ss:$2 sm:$0xff]
        %s1649 = scalar_lea.vmem [#allocation3], 263
        %v1650 = vld [vmem:[%s1649] ss:$2 sm:$0xff]
        %s1651 = scalar_lea.vmem [#allocation3], 327
        %v1652 = vld [vmem:[%s1651] ss:$2 sm:$0xff]
        %s1653 = scalar_lea.vmem [#allocation3], 391
        %v1654 = vld [vmem:[%s1653] ss:$2 sm:$0xff]
        %s1655 = scalar_lea.vmem [#allocation3], 455
        %v1656 = vld [vmem:[%s1655] ss:$2 sm:$0xff]
        %v1657 = vperm.slane %v448, 0
        %v1658 = vmul.f32 %v1642, %v1657
        %v1659 = vmul.f32 %v1644, %v1657
        %v1660 = vmul.f32 %v1646, %v1657
        %v1661 = vmul.f32 %v1648, %v1657
        %v1662 = vmul.f32 %v1650, %v1657
        %v1663 = vmul.f32 %v1652, %v1657
        %v1664 = vmul.f32 %v1654, %v1657
        %v1665 = vmul.f32 %v1656, %v1657
        %s1666 = scalar_lea.vmem [#allocation3], 8
        %v1667 = vld [vmem:[%s1666] ss:$2 sm:$0xff]
        %s1668 = scalar_lea.vmem [#allocation3], 72
        %v1669 = vld [vmem:[%s1668] ss:$2 sm:$0xff]
        %s1670 = scalar_lea.vmem [#allocation3], 136
        %v1671 = vld [vmem:[%s1670] ss:$2 sm:$0xff]
        %s1672 = scalar_lea.vmem [#allocation3], 200
        %v1673 = vld [vmem:[%s1672] ss:$2 sm:$0xff]
        %s1674 = scalar_lea.vmem [#allocation3], 264
        %v1675 = vld [vmem:[%s1674] ss:$2 sm:$0xff]
        %s1676 = scalar_lea.vmem [#allocation3], 328
        %v1677 = vld [vmem:[%s1676] ss:$2 sm:$0xff]
        %s1678 = scalar_lea.vmem [#allocation3], 392
        %v1679 = vld [vmem:[%s1678] ss:$2 sm:$0xff]
        %s1680 = scalar_lea.vmem [#allocation3], 456
        %v1681 = vld [vmem:[%s1680] ss:$2 sm:$0xff]
        %v1682 = vperm.slane %v448, 1
        %v1683 = vmul.f32 %v1667, %v1682
        %v1684 = vmul.f32 %v1669, %v1682
        %v1685 = vmul.f32 %v1671, %v1682
        %v1686 = vmul.f32 %v1673, %v1682
        %v1687 = vmul.f32 %v1675, %v1682
        %v1688 = vmul.f32 %v1677, %v1682
        %v1689 = vmul.f32 %v1679, %v1682
        %v1690 = vmul.f32 %v1681, %v1682
        %v1691 = vadd.f32 %v1658, %v1683
        %v1692 = vadd.f32 %v1659, %v1684
        %v1693 = vadd.f32 %v1660, %v1685
        %v1694 = vadd.f32 %v1661, %v1686
        %v1695 = vadd.f32 %v1662, %v1687
        %v1696 = vadd.f32 %v1663, %v1688
        %v1697 = vadd.f32 %v1664, %v1689
        %v1698 = vadd.f32 %v1665, %v1690
        %s1699 = scalar_lea.vmem [#allocation3], 9
        %v1700 = vld [vmem:[%s1699] ss:$2 sm:$0xff]
        %s1701 = scalar_lea.vmem [#allocation3], 73
        %v1702 = vld [vmem:[%s1701] ss:$2 sm:$0xff]
        %s1703 = scalar_lea.vmem [#allocation3], 137
        %v1704 = vld [vmem:[%s1703] ss:$2 sm:$0xff]
        %s1705 = scalar_lea.vmem [#allocation3], 201
        %v1706 = vld [vmem:[%s1705] ss:$2 sm:$0xff]
        %s1707 = scalar_lea.vmem [#allocation3], 265
        %v1708 = vld [vmem:[%s1707] ss:$2 sm:$0xff]
        %s1709 = scalar_lea.vmem [#allocation3], 329
        %v1710 = vld [vmem:[%s1709] ss:$2 sm:$0xff]
        %s1711 = scalar_lea.vmem [#allocation3], 393
        %v1712 = vld [vmem:[%s1711] ss:$2 sm:$0xff]
        %s1713 = scalar_lea.vmem [#allocation3], 457
        %v1714 = vld [vmem:[%s1713] ss:$2 sm:$0xff]
        %v1715 = vperm.slane %v448, 2
        %v1716 = vmul.f32 %v1700, %v1715
        %v1717 = vmul.f32 %v1702, %v1715
        %v1718 = vmul.f32 %v1704, %v1715
        %v1719 = vmul.f32 %v1706, %v1715
        %v1720 = vmul.f32 %v1708, %v1715
        %v1721 = vmul.f32 %v1710, %v1715
        %v1722 = vmul.f32 %v1712, %v1715
        %v1723 = vmul.f32 %v1714, %v1715
        %v1724 = vadd.f32 %v1691, %v1716
        %v1725 = vadd.f32 %v1692, %v1717
        %v1726 = vadd.f32 %v1693, %v1718
        %v1727 = vadd.f32 %v1694, %v1719
        %v1728 = vadd.f32 %v1695, %v1720
        %v1729 = vadd.f32 %v1696, %v1721
        %v1730 = vadd.f32 %v1697, %v1722
        %v1731 = vadd.f32 %v1698, %v1723
        %s1732 = scalar_lea.vmem %s463, 7 [#allocation3]
        %v1733 = vld [vmem:[%s1732] ss:$2 sm:$0xff]
        %s1734 = scalar_lea.vmem %s463, 71 [#allocation3]
        %v1735 = vld [vmem:[%s1734] ss:$2 sm:$0xff]
        %s1736 = scalar_lea.vmem %s463, 135 [#allocation3]
        %v1737 = vld [vmem:[%s1736] ss:$2 sm:$0xff]
        %s1738 = scalar_lea.vmem %s463, 199 [#allocation3]
        %v1739 = vld [vmem:[%s1738] ss:$2 sm:$0xff]
        %s1740 = scalar_lea.vmem %s463, 263 [#allocation3]
        %v1741 = vld [vmem:[%s1740] ss:$2 sm:$0xff]
        %s1742 = scalar_lea.vmem %s463, 327 [#allocation3]
        %v1743 = vld [vmem:[%s1742] ss:$2 sm:$0xff]
        %s1744 = scalar_lea.vmem %s463, 391 [#allocation3]
        %v1745 = vld [vmem:[%s1744] ss:$2 sm:$0xff]
        %s1746 = scalar_lea.vmem %s463, 455 [#allocation3]
        %v1747 = vld [vmem:[%s1746] ss:$2 sm:$0xff]
        %v1748 = vperm.slane %v449, 0
        %v1749 = vmul.f32 %v1733, %v1748
        %v1750 = vmul.f32 %v1735, %v1748
        %v1751 = vmul.f32 %v1737, %v1748
        %v1752 = vmul.f32 %v1739, %v1748
        %v1753 = vmul.f32 %v1741, %v1748
        %v1754 = vmul.f32 %v1743, %v1748
        %v1755 = vmul.f32 %v1745, %v1748
        %v1756 = vmul.f32 %v1747, %v1748
        %v1757 = vadd.f32 %v1724, %v1749
        %v1758 = vadd.f32 %v1725, %v1750
        %v1759 = vadd.f32 %v1726, %v1751
        %v1760 = vadd.f32 %v1727, %v1752
        %v1761 = vadd.f32 %v1728, %v1753
        %v1762 = vadd.f32 %v1729, %v1754
        %v1763 = vadd.f32 %v1730, %v1755
        %v1764 = vadd.f32 %v1731, %v1756
        %s1765 = scalar_lea.vmem %s463, 8 [#allocation3]
        %v1766 = vld [vmem:[%s1765] ss:$2 sm:$0xff]
        %s1767 = scalar_lea.vmem %s463, 72 [#allocation3]
        %v1768 = vld [vmem:[%s1767] ss:$2 sm:$0xff]
        %s1769 = scalar_lea.vmem %s463, 136 [#allocation3]
        %v1770 = vld [vmem:[%s1769] ss:$2 sm:$0xff]
        %s1771 = scalar_lea.vmem %s463, 200 [#allocation3]
        %v1772 = vld [vmem:[%s1771] ss:$2 sm:$0xff]
        %s1773 = scalar_lea.vmem %s463, 264 [#allocation3]
        %v1774 = vld [vmem:[%s1773] ss:$2 sm:$0xff]
        %s1775 = scalar_lea.vmem %s463, 328 [#allocation3]
        %v1776 = vld [vmem:[%s1775] ss:$2 sm:$0xff]
        %s1777 = scalar_lea.vmem %s463, 392 [#allocation3]
        %v1778 = vld [vmem:[%s1777] ss:$2 sm:$0xff]
        %s1779 = scalar_lea.vmem %s463, 456 [#allocation3]
        %v1780 = vld [vmem:[%s1779] ss:$2 sm:$0xff]
        %v1781 = vperm.slane %v449, 1
        %v1782 = vmul.f32 %v1766, %v1781
        %v1783 = vmul.f32 %v1768, %v1781
        %v1784 = vmul.f32 %v1770, %v1781
        %v1785 = vmul.f32 %v1772, %v1781
        %v1786 = vmul.f32 %v1774, %v1781
        %v1787 = vmul.f32 %v1776, %v1781
        %v1788 = vmul.f32 %v1778, %v1781
        %v1789 = vmul.f32 %v1780, %v1781
        %v1790 = vadd.f32 %v1757, %v1782
        %v1791 = vadd.f32 %v1758, %v1783
        %v1792 = vadd.f32 %v1759, %v1784
        %v1793 = vadd.f32 %v1760, %v1785
        %v1794 = vadd.f32 %v1761, %v1786
        %v1795 = vadd.f32 %v1762, %v1787
        %v1796 = vadd.f32 %v1763, %v1788
        %v1797 = vadd.f32 %v1764, %v1789
        %s1798 = scalar_lea.vmem %s463, 9 [#allocation3]
        %v1799 = vld [vmem:[%s1798] ss:$2 sm:$0xff]
        %s1800 = scalar_lea.vmem %s463, 73 [#allocation3]
        %v1801 = vld [vmem:[%s1800] ss:$2 sm:$0xff]
        %s1802 = scalar_lea.vmem %s463, 137 [#allocation3]
        %v1803 = vld [vmem:[%s1802] ss:$2 sm:$0xff]
        %s1804 = scalar_lea.vmem %s463, 201 [#allocation3]
        %v1805 = vld [vmem:[%s1804] ss:$2 sm:$0xff]
        %s1806 = scalar_lea.vmem %s463, 265 [#allocation3]
        %v1807 = vld [vmem:[%s1806] ss:$2 sm:$0xff]
        %s1808 = scalar_lea.vmem %s463, 329 [#allocation3]
        %v1809 = vld [vmem:[%s1808] ss:$2 sm:$0xff]
        %s1810 = scalar_lea.vmem %s463, 393 [#allocation3]
        %v1811 = vld [vmem:[%s1810] ss:$2 sm:$0xff]
        %s1812 = scalar_lea.vmem %s463, 457 [#allocation3]
        %v1813 = vld [vmem:[%s1812] ss:$2 sm:$0xff]
        %v1814 = vperm.slane %v449, 2
        %v1815 = vmul.f32 %v1799, %v1814
        %v1816 = vmul.f32 %v1801, %v1814
        %v1817 = vmul.f32 %v1803, %v1814
        %v1818 = vmul.f32 %v1805, %v1814
        %v1819 = vmul.f32 %v1807, %v1814
        %v1820 = vmul.f32 %v1809, %v1814
        %v1821 = vmul.f32 %v1811, %v1814
        %v1822 = vmul.f32 %v1813, %v1814
        %v1823 = vadd.f32 %v1790, %v1815
        %v1824 = vadd.f32 %v1791, %v1816
        %v1825 = vadd.f32 %v1792, %v1817
        %v1826 = vadd.f32 %v1793, %v1818
        %v1827 = vadd.f32 %v1794, %v1819
        %v1828 = vadd.f32 %v1795, %v1820
        %v1829 = vadd.f32 %v1796, %v1821
        %v1830 = vadd.f32 %v1797, %v1822
        %s1831 = scalar_lea.vmem [#allocation3], 64
        %s1832 = scalar_lea.vmem %s1831, 7 [#allocation3]
        %v1833 = vld [vmem:[%s1832] ss:$2 sm:$0xff]
        %s1834 = scalar_lea.vmem %s1831, 71 [#allocation3]
        %v1835 = vld [vmem:[%s1834] ss:$2 sm:$0xff]
        %s1836 = scalar_lea.vmem %s1831, 135 [#allocation3]
        %v1837 = vld [vmem:[%s1836] ss:$2 sm:$0xff]
        %s1838 = scalar_lea.vmem %s1831, 199 [#allocation3]
        %v1839 = vld [vmem:[%s1838] ss:$2 sm:$0xff]
        %s1840 = scalar_lea.vmem %s1831, 263 [#allocation3]
        %v1841 = vld [vmem:[%s1840] ss:$2 sm:$0xff]
        %s1842 = scalar_lea.vmem %s1831, 327 [#allocation3]
        %v1843 = vld [vmem:[%s1842] ss:$2 sm:$0xff]
        %s1844 = scalar_lea.vmem %s1831, 391 [#allocation3]
        %v1845 = vld [vmem:[%s1844] ss:$2 sm:$0xff]
        %s1846 = scalar_lea.vmem %s1831, 455 [#allocation3]
        %v1847 = vld [vmem:[%s1846] ss:$2 sm:$0xff]
        %v1848 = vperm.slane %v450, 0
        %v1849 = vmul.f32 %v1833, %v1848
        %v1850 = vmul.f32 %v1835, %v1848
        %v1851 = vmul.f32 %v1837, %v1848
        %v1852 = vmul.f32 %v1839, %v1848
        %v1853 = vmul.f32 %v1841, %v1848
        %v1854 = vmul.f32 %v1843, %v1848
        %v1855 = vmul.f32 %v1845, %v1848
        %v1856 = vmul.f32 %v1847, %v1848
        %v1857 = vadd.f32 %v1823, %v1849
        %v1858 = vadd.f32 %v1824, %v1850
        %v1859 = vadd.f32 %v1825, %v1851
        %v1860 = vadd.f32 %v1826, %v1852
        %v1861 = vadd.f32 %v1827, %v1853
        %v1862 = vadd.f32 %v1828, %v1854
        %v1863 = vadd.f32 %v1829, %v1855
        %v1864 = vadd.f32 %v1830, %v1856
        %s1865 = scalar_lea.vmem %s1831, 8 [#allocation3]
        %v1866 = vld [vmem:[%s1865] ss:$2 sm:$0xff]
        %s1867 = scalar_lea.vmem %s1831, 72 [#allocation3]
        %v1868 = vld [vmem:[%s1867] ss:$2 sm:$0xff]
        %s1869 = scalar_lea.vmem %s1831, 136 [#allocation3]
        %v1870 = vld [vmem:[%s1869] ss:$2 sm:$0xff]
        %s1871 = scalar_lea.vmem %s1831, 200 [#allocation3]
        %v1872 = vld [vmem:[%s1871] ss:$2 sm:$0xff]
        %s1873 = scalar_lea.vmem %s1831, 264 [#allocation3]
        %v1874 = vld [vmem:[%s1873] ss:$2 sm:$0xff]
        %s1875 = scalar_lea.vmem %s1831, 328 [#allocation3]
        %v1876 = vld [vmem:[%s1875] ss:$2 sm:$0xff]
        %s1877 = scalar_lea.vmem %s1831, 392 [#allocation3]
        %v1878 = vld [vmem:[%s1877] ss:$2 sm:$0xff]
        %s1879 = scalar_lea.vmem %s1831, 456 [#allocation3]
        %v1880 = vld [vmem:[%s1879] ss:$2 sm:$0xff]
        %v1881 = vperm.slane %v450, 1
        %v1882 = vmul.f32 %v1866, %v1881
        %v1883 = vmul.f32 %v1868, %v1881
        %v1884 = vmul.f32 %v1870, %v1881
        %v1885 = vmul.f32 %v1872, %v1881
        %v1886 = vmul.f32 %v1874, %v1881
        %v1887 = vmul.f32 %v1876, %v1881
        %v1888 = vmul.f32 %v1878, %v1881
        %v1889 = vmul.f32 %v1880, %v1881
        %v1890 = vadd.f32 %v1857, %v1882
        %v1891 = vadd.f32 %v1858, %v1883
        %v1892 = vadd.f32 %v1859, %v1884
        %v1893 = vadd.f32 %v1860, %v1885
        %v1894 = vadd.f32 %v1861, %v1886
        %v1895 = vadd.f32 %v1862, %v1887
        %v1896 = vadd.f32 %v1863, %v1888
        %v1897 = vadd.f32 %v1864, %v1889
        %s1898 = scalar_lea.vmem %s1831, 9 [#allocation3]
        %v1899 = vld [vmem:[%s1898] ss:$2 sm:$0xff]
        %s1900 = scalar_lea.vmem %s1831, 73 [#allocation3]
        %v1901 = vld [vmem:[%s1900] ss:$2 sm:$0xff]
        %s1902 = scalar_lea.vmem %s1831, 137 [#allocation3]
        %v1903 = vld [vmem:[%s1902] ss:$2 sm:$0xff]
        %s1904 = scalar_lea.vmem %s1831, 201 [#allocation3]
        %v1905 = vld [vmem:[%s1904] ss:$2 sm:$0xff]
        %s1906 = scalar_lea.vmem %s1831, 265 [#allocation3]
        %v1907 = vld [vmem:[%s1906] ss:$2 sm:$0xff]
        %s1908 = scalar_lea.vmem %s1831, 329 [#allocation3]
        %v1909 = vld [vmem:[%s1908] ss:$2 sm:$0xff]
        %s1910 = scalar_lea.vmem %s1831, 393 [#allocation3]
        %v1911 = vld [vmem:[%s1910] ss:$2 sm:$0xff]
        %s1912 = scalar_lea.vmem %s1831, 457 [#allocation3]
        %v1913 = vld [vmem:[%s1912] ss:$2 sm:$0xff]
        %v1914 = vperm.slane %v450, 2
        %v1915 = vmul.f32 %v1899, %v1914
        %v1916 = vmul.f32 %v1901, %v1914
        %v1917 = vmul.f32 %v1903, %v1914
        %v1918 = vmul.f32 %v1905, %v1914
        %v1919 = vmul.f32 %v1907, %v1914
        %v1920 = vmul.f32 %v1909, %v1914
        %v1921 = vmul.f32 %v1911, %v1914
        %v1922 = vmul.f32 %v1913, %v1914
        %v1923 = vadd.f32 %v1890, %v1915
        %v1924 = vadd.f32 %v1891, %v1916
        %v1925 = vadd.f32 %v1892, %v1917
        %v1926 = vadd.f32 %v1893, %v1918
        %v1927 = vadd.f32 %v1894, %v1919
        %v1928 = vadd.f32 %v1895, %v1920
        %v1929 = vadd.f32 %v1896, %v1921
        %v1930 = vadd.f32 %v1897, %v1922
        %v1932 = vperm.slane %v451, 0
        %v1934 = vadd.f32 %v1923, %v1932
        %v1935 = vadd.f32 %v1924, %v1932
        %v1936 = vadd.f32 %v1925, %v1932
        %v1937 = vadd.f32 %v1926, %v1932
        %v1938 = vadd.f32 %v1927, %v1932
        %v1939 = vadd.f32 %v1928, %v1932
        %v1940 = vadd.f32 %v1929, %v1932
        %v1941 = vadd.f32 %v1930, %v1932
        %v1942 = vmax.f32 %v1934, 0.0
        %v1943 = vmax.f32 %v1935, 0.0
        %v1944 = vmax.f32 %v1936, 0.0
        %v1945 = vmax.f32 %v1937, 0.0
        %v1946 = vmax.f32 %v1938, 0.0
        %v1947 = vmax.f32 %v1939, 0.0
        %v1948 = vmax.f32 %v1940, 0.0
        %v1949 = vmax.f32 %v1941, 0.0
        %v1950 = vmin.f32 %v1942, 6.0
        %v1951 = vmin.f32 %v1943, 6.0
        %v1952 = vmin.f32 %v1944, 6.0
        %v1953 = vmin.f32 %v1945, 6.0
        %v1954 = vmin.f32 %v1946, 6.0
        %v1955 = vmin.f32 %v1947, 6.0
        %v1956 = vmin.f32 %v1948, 6.0
        %v1957 = vmin.f32 %v1949, 6.0
        %v1958 = vpack.c.bf16 %v1950, %v1950
        %v1959 = vpack.c.bf16 %v1951, %v1951
        %v1960 = vpack.c.bf16 %v1952, %v1952
        %v1961 = vpack.c.bf16 %v1953, %v1953
        %v1962 = vpack.c.bf16 %v1954, %v1954
        %v1963 = vpack.c.bf16 %v1955, %v1955
        %v1964 = vpack.c.bf16 %v1956, %v1956
        %v1965 = vpack.c.bf16 %v1957, %v1957
        %vm1966 = vcmask 257024
        %1967 = vst.msk [vmem:[#allocation4] sm:$0xf] %vm1966, %v1958
        %1968 = vst.msk [vmem:[#allocation4 + $0x4] sm:$0xf] %vm1966, %v1959
        %1969 = vst.msk [vmem:[#allocation4 + $0x8] sm:$0xf] %vm1966, %v1960
        %1970 = vst.msk [vmem:[#allocation4 + $0xc] sm:$0xf] %vm1966, %v1961
        %1971 = vst.msk [vmem:[#allocation4 + $0x10] sm:$0xf] %vm1966, %v1962
        %1972 = vst.msk [vmem:[#allocation4 + $0x14] sm:$0xf] %vm1966, %v1963
        %1973 = vst.msk [vmem:[#allocation4 + $0x18] sm:$0xf] %vm1966, %v1964
        %1974 = vst.msk [vmem:[#allocation4 + $0x1c] sm:$0xf] %vm1966, %v1965
        %v1975 = vld [vmem:[%s7] sm:$0xf]
        %v1976 = vld [vmem:[%s7 + $0x4] sm:$0xf]
        %v1977 = vld [vmem:[%s8] sm:$0xff]
        %v1978 = vld [vmem:[%s8 + $0x8] sm:$0xff]
        %v1979 = vld [vmem:[#allocation4] sm:$0xf]
        %v1980 = vld [vmem:[#allocation4 + $0x4] sm:$0xf]
        %v1981 = vld [vmem:[#allocation4 + $0x8] sm:$0xf]
        %v1982 = vld [vmem:[#allocation4 + $0xc] sm:$0xf]
        %v1983 = vld [vmem:[#allocation4 + $0x10] sm:$0xf]
        %v1984 = vld [vmem:[#allocation4 + $0x14] sm:$0xf]
        %v1985 = vld [vmem:[#allocation4 + $0x18] sm:$0xf]
        %v1986 = vld [vmem:[#allocation4 + $0x1c] sm:$0xf]
        %1988 = vset.pattern.permute.xlu0 0
        %1989 = vperm.xlu0 %1988, %v1977
        %v1990 = vpop.permute.xlu0 %1989
        %1993 = vset.pattern.permute.xlu0 0
        %1994 = vperm.xlu0 %1993, %v1978
        %v1995 = vpop.permute.xlu0 %1994
        %v1999 = vunpack.c.l.b16 %v1975
        %v2000 = vunpack.c.l.b16 %v1976
        %v2001 = vpack.c.b16 %v2000, %v1999
        %v2010 = vunpack.c.l.b16 %v1979
        %v2011 = vunpack.c.l.b16 %v1980
        %v2012 = vunpack.c.l.b16 %v1981
        %v2013 = vunpack.c.l.b16 %v1982
        %v2014 = vunpack.c.l.b16 %v1983
        %v2015 = vunpack.c.l.b16 %v1984
        %v2016 = vunpack.c.l.b16 %v1985
        %v2017 = vunpack.c.l.b16 %v1986
        %v2018 = vpack.c.b16 %v2011, %v2010
        %v2019 = vpack.c.b16 %v2013, %v2012
        %v2020 = vpack.c.b16 %v2015, %v2014
        %v2021 = vpack.c.b16 %v2017, %v2016
        %v2023 = vsel %vm452, %v2001, 0
        %v2026 = vsel %vm452, %v2018, 0
        %v2029 = vsel %vm452, %v2019, 0
        %v2032 = vsel %vm452, %v2020, 0
        %v2035 = vsel %vm452, %v2021, 0
        %2037 = vmatpush.bf16.xpose.msra.mxu0 0
        %2038 = vmatpush.bf16.xpose.msra.mxu0 0
        %2039 = vmatpush.bf16.xpose.msra.mxu0 0
        %2040 = vmatpush.bf16.xpose.msra.mxu0 0
        %2041 = vmatpush.bf16.xpose.msra.mxu0 %v2035
        %2042 = vmatpush.bf16.xpose.msra.mxu0 %v2032
        %2043 = vmatpush.bf16.xpose.msra.mxu0 %v2029
        %2044 = vmatpush.bf16.xpose.msra.mxu0 %v2026
        %2045 = vmatmul.bf16.gmra.mxu0 %v2023
        %v2046 = vpop.f32.mrf.mxu0
        %v2047 = vadd.f32 %v1990, %v2046
        %v2048 = vpop.f32.mrf.mxu0
        %v2049 = vadd.f32 %v1995, %v2048
        %2050 = vdwg.mxu0
        %vm2051 = vcmask 523264
        %2052 = vst.msk [vmem:[%s325] sm:$0xff] %vm2051, %v2047
        %2053 = vst.msk [vmem:[%s325 + $0x8] sm:$0xff] %vm2051, %v2049
        %s2054 = sand.u32 %s225, 1
        %s2055 = scalar_lea.sflag [#allocation6], %s2054
        %s2056 = sand.u32 %s225, 1
        %s2057 = smul.addr %s2056, 16
        %s2058 = scalar_lea.vmem [#allocation5], %s2057
        // Predicated region
        $region57: #{tpu_custom_call.1} parent=55 // pred_check
          %p2059 = pneg %p235
        $region58: #{tpu_custom_call.1} parent=55 // pred_check_branch
          %2061 = sbr.rel (%p2059) target = $region60
        $region59: #{tpu_custom_call.1} parent=55 // pred_region
          %2063 = vsyncadd %s2055, 0
          %s2064 = smul.addr %s23, 2
          %s2065 = smul.addr %s2064, 8
          %s2066 = scalar_lea.hbm %s9, %s2065
          %s2067 = sshll.u32 %s2058, 4
          %s2068 = int_to_ptr.vmem [resolvable:$true] %s2067
          %s2069 = sshll.u32 %s2066, 4
          %s2070 = int_to_ptr.hbm [resolvable:$true] %s2069
          %2075 = dma.vmem_to_hbm [thread:$0]  %s2068, 256, %s2070, %s2055, 128, 128, 8
        $region60: #{tpu_custom_call.1} parent=55 // pred_fallthru
          _
      $region56: #{tpu_custom_call.1} parent=5 // pred_fallthru
        _
      %p2076 = scmp.le.s32.totalorder 2, %s18
      // Predicated region
      $region61: #{tpu_custom_call.1} parent=5 // pred_check
        %p2077 = pneg %p2076
      $region62: #{tpu_custom_call.1} parent=5 // pred_check_branch
        %2079 = sbr.rel (%p2077) target = $region64
      $region63: #{tpu_custom_call.1} parent=5 // pred_region
        %s2080 = ssub.s32 %s18, 2
        // Predicated region
        $region65: #{tpu_custom_call.1} parent=63 // pred_check
          %p2081 = pneg %p241
        $region66: #{tpu_custom_call.1} parent=63 // pred_check_branch
          %2083 = sbr.rel (%p2081) target = $region68
        $region67: #{tpu_custom_call.1} parent=63 // pred_region
          %s2084 = sand.u32 %s226, 1
          %s2085 = scalar_lea.sflag [#allocation6], %s2084
          %s2086 = sand.u32 %s226, 1
          %s2087 = smul.addr %s2086, 16
          %s2088 = scalar_lea.vmem [#allocation5], %s2087
          %2090 = dma.done %s2085, 256
        $region68: #{tpu_custom_call.1} parent=63 // pred_fallthru
          _
      $region64: #{tpu_custom_call.1} parent=5 // pred_fallthru
        _
    $region6: #{tpu_custom_call.1} parent=1 // loop_footer
      %s22 = sadd.s32 1, %s18
    $region7: #{tpu_custom_call.1} parent=1 // loop_footer_branch
      %17 = sbr.rel target = $region3
    $region8: #{tpu_custom_call.1} parent=1 // loop_exit
      _
    %2091 = vsyncpa [#allocation6], 1
    %s2092 = scalar_lea.sflag [#allocation6], 1
    %2093 = vsyncpa %s2092, 1

</llo_original>
